<compile_context>
chip_gen: v5e
topology: v5e:2x2
jax: 0.10.0
libtpu: 0.0.40
codegen_flags: <defaults>
</compile_context>

<pallas_src>
import jax
import jax.numpy as jnp
from jax import lax
from jax.experimental import pallas as pl
from jax.experimental.pallas import tpu as pltpu


_SCALE = 64.0    # AM-Softmax scale s
_MARGIN = 0.35   # AM-Softmax margin m


# ------------------------------ fused kernel -------------------------------

def _face_fused_kernel(x_ref, wbb_ref, whead_ref, wadapt_ref, label_ref,
                       pred_ref, proj_ref, feat_ref, scale_ref):
    """One (batch-tile, class-tile) grid step.

    Grid axis 0 ("parallel"): batch tiles.  Grid axis 1 ("arbitrary"): class tiles.
    feat_ref / scale_ref are VMEM scratch persisting across the class axis.
    """
    j = pl.program_id(1)

    # ---- first class tile only: class-invariant work (backbone + adaptor) ----
    @pl.when(j == 0)
    def _():
        # backbone: feat = x @ W_bb  (bf16 operands, f32 accumulation)
        feat = jnp.dot(x_ref[...], wbb_ref[...],
                       preferred_element_type=jnp.float32)          # [bb, F] f32
        # s / ||feat|| computed right away so the f32 feat tile dies early.
        # (Head matmul below uses the bf16-cast feature, so |cos| may exceed 1 by
        #  ~1e-3; benign for training, same behavior as the previous version.)
        scale_ref[...] = _SCALE * lax.rsqrt(
            jnp.sum(feat * feat, axis=-1, keepdims=True) + 1e-12)   # [bb, 1] f32
        fb = feat.astype(jnp.bfloat16)
        feat_ref[...] = fb                                          # [bb, F] bf16
        # adaptor: Conv2d(512,512,1,bias=False) on a 1x1 map == feat @ W_adaptor.T;
        # the weight is pre-transposed to [in, out] at init -> plain MXU matmul.
        proj_ref[...] = jnp.dot(fb, wadapt_ref[...],
                                preferred_element_type=jnp.float32)

    # ---- every class tile: margin-cosine logits for this slice of classes ----
    # Head-weight columns are pre-L2-normalized at init, so
    #   scaled = s * cos(feat, W_head[:, tile])   with a single [bb, tc] multiply.
    logits = jnp.dot(feat_ref[...], whead_ref[...],
                     preferred_element_type=jnp.float32)            # [bb, tc] f32
    scaled = logits * scale_ref[...]
    bb, tc = scaled.shape
    col = j * tc + lax.broadcasted_iota(jnp.int32, (bb, tc), 1)
    is_label = col == label_ref[...]                                # [bb,1] broadcast
    pred_ref[...] = jnp.where(is_label, scaled - _SCALE * _MARGIN, scaled)


# ---------------------------- parameter prep -------------------------------

def prepare_face_params(w_backbone, w_head, w_adaptor):
    """One-time (init-time) hoist of all grid-invariant weight preparation."""
    w_backbone_bf = w_backbone.astype(jnp.bfloat16)
    w32 = w_head.astype(jnp.float32)
    inv_col = lax.rsqrt(jnp.sum(w32 * w32, axis=0, keepdims=True) + 1e-12)
    w_head_n = (w32 * inv_col).astype(jnp.bfloat16)          # column-normalized
    w_adaptor_t = jnp.transpose(w_adaptor).astype(jnp.bfloat16)   # [out,in]->[in,out]
    return w_backbone_bf, w_head_n, w_adaptor_t


# ------------------------------ model forward ------------------------------

def face_model_forward(data, label, w_backbone, w_head_n, w_adaptor_t,
                       *, block_b=256, tile_c=1024):
    """FaceModel.forward(data, label) -> (pred, squeezed projected_feat).

    data:        [B, C, H, W] float (NCHW, like the PyTorch input)
    label:       [B] int
    w_backbone:  [C*H*W, 512] bf16   (synthetic linear backbone stand-in)
    w_head_n:    [512, num_classes] bf16, columns pre-L2-normalized
    w_adaptor_t: [512, 512] bf16, adaptor weight pre-transposed to [in, out]

    block_b: batch-tile rows. 256 fills the v6e/v7x 256-wide MXU; use 128 on v5e.
    tile_c : class-tile width for streaming the head weight (multiple of 128).
    """
    B = data.shape[0]
    x = data.reshape(B, -1).astype(jnp.bfloat16)
    K = x.shape[1]
    F = w_adaptor_t.shape[0]
    C = w_head_n.shape[1]

    # --- class tiling (keeps real head sizes under the VMEM limit) ---
    if C <= tile_c or C % tile_c != 0:
        # TODO(synk): pad num_classes up to a multiple of tile_c for huge ragged C.
        tile_c = C
    num_c_tiles = C // tile_c

    # --- batch padding: always take the tiled / megacore-shardable path ---
    block_b = max(8, -(-block_b // 8) * 8)
    pad = -B % 8
    if B + pad <= block_b:
        block_b = B + pad
    else:
        pad = -B % block_b
    Bp = B + pad
    if pad:
        x = jnp.pad(x, ((0, pad), (0, 0)))
        label = jnp.pad(label, (0, pad), constant_values=-1)   # never matches a class
    label2d = label.reshape(Bp, 1).astype(jnp.int32)

    grid = (Bp // block_b, num_c_tiles)

    # Working-set estimate (double-buffered operands + outputs + scratch).
    ws = 2 * (block_b * K * 2 + K * F * 2 + F * tile_c * 2 + F * F * 2
              + block_b * 4 + block_b * tile_c * 4 + block_b * F * 4) \
        + block_b * F * 2 + block_b * 4
    vmem_limit = int(min(max(2 * ws, 16 << 20), 64 << 20))

    pred, proj = pl.pallas_call(
        _face_fused_kernel,
        out_shape=(jax.ShapeDtypeStruct((Bp, C), jnp.float32),
                   jax.ShapeDtypeStruct((Bp, F), jnp.float32)),
        grid=grid,
        in_specs=[
            pl.BlockSpec((block_b, K), lambda i, j: (i, 0)),
            # TODO(synk): for real backbones (K in the tens of thousands) add a K
            # grid axis with an f32 feat accumulator; the linear stand-in keeps
            # W_bb resident. Grid-invariant weight specs could also use
            # pipeline_mode=pl.Buffered(1) to halve their VMEM on v7x.
            pl.BlockSpec((K, F), lambda i, j: (0, 0)),
            pl.BlockSpec((F, tile_c), lambda i, j: (0, j)),
            pl.BlockSpec((F, F), lambda i, j: (0, 0)),
            pl.BlockSpec((block_b, 1), lambda i, j: (i, 0)),
        ],
        out_specs=(
            pl.BlockSpec((block_b, tile_c), lambda i, j: (i, j)),
            # proj is class-invariant: keep it resident across the class axis and
            # write it exactly once (pl.when(j == 0) in the kernel).
            pl.BlockSpec((block_b, F), lambda i, j: (i, 0)),
        ),
        scratch_shapes=[
            pltpu.VMEM((block_b, F), jnp.bfloat16),   # feat, reused per class tile
            pltpu.VMEM((block_b, 1), jnp.float32),    # s / ||feat||
        ],
        compiler_params=pltpu.CompilerParams(
            dimension_semantics=("parallel", "arbitrary"),
            vmem_limit_bytes=vmem_limit),
    )(x, w_backbone, w_head_n, w_adaptor_t, label2d)

    if pad:
        pred = pred[:B]
        proj = proj[:B]
    return pred, proj


# ---------------------------------- main -----------------------------------

if __name__ == "__main__":
    key = jax.random.PRNGKey(0)
    k_data, k_bb, k_head, k_adapt = jax.random.split(key, 4)

    B, CIN, H, W = 2, 4, 16, 16
    FEAT_DIM = 512            # fixed by nn.Conv2d(512, 512, 1, bias=False)
    NUM_CLASSES = 128

    data = jax.random.normal(k_data, (B, CIN, H, W), dtype=jnp.float32)
    label = jnp.array([3, 77], dtype=jnp.int32)

    # Deterministic parameter init (backbone/head are factory-provided in the
    # original; synthetic stand-ins here).
    w_backbone = 0.05 * jax.random.normal(k_bb, (CIN * H * W, FEAT_DIM), jnp.float32)
    w_head = 0.05 * jax.random.normal(k_head, (FEAT_DIM, NUM_CLASSES), jnp.float32)
    # nn.init.normal_(self.adaptor.weight, 0, 0.1); [512, 512, 1, 1] -> [512, 512]
    w_adaptor = 0.1 * jax.random.normal(k_adapt, (FEAT_DIM, FEAT_DIM), jnp.float32)

    # One-time hoist of all grid-invariant weight prep (cast / col-norm / transpose).
    w_backbone_p, w_head_p, w_adaptor_p = prepare_face_params(
        w_backbone, w_head, w_adaptor)

    fwd = jax.jit(face_model_forward)
    pred, projected_feat = fwd(data, label, w_backbone_p, w_head_p, w_adaptor_p)
    jax.block_until_ready((pred, projected_feat))

    assert pred.shape == (B, NUM_CLASSES)
    assert projected_feat.shape == (B, FEAT_DIM)
    assert jnp.all(jnp.isfinite(pred)) and jnp.all(jnp.isfinite(projected_feat))

    print("KERNEL_OK")
</pallas_src>

<mosaic_0001>
module attributes {stable_mosaic.version = 11 : i64} {
  func.func @_face_fused_kernel(%arg0: i32, %arg1: i32, %arg2: memref<8x1024xbf16, #tpu.memory_space<vmem>>, %arg3: memref<1024x512xbf16, #tpu.memory_space<vmem>>, %arg4: memref<512x128xbf16, #tpu.memory_space<vmem>>, %arg5: memref<512x512xbf16, #tpu.memory_space<vmem>>, %arg6: memref<8x1xi32, #tpu.memory_space<vmem>>, %arg7: memref<8x128xf32, #tpu.memory_space<vmem>>, %arg8: memref<8x512xf32, #tpu.memory_space<vmem>>, %arg9: memref<8x512xbf16, #tpu.memory_space<vmem>>, %arg10: memref<8x1xf32, #tpu.memory_space<vmem>>) attributes {dimension_semantics = [#tpu.dimension_semantics<parallel>, #tpu.dimension_semantics<arbitrary>], iteration_bounds = array<i64: 1, 1>, scalar_prefetch = 0 : i64, scratch_operands = 2 : i64, tpu.core_type = #tpu.core_type<tc>, window_params = [{transform_indices = @transform_0, window_bounds = array<i64: 8, 1024>}, {pipeline_mode = #tpu.pipeline_mode<synchronous>, transform_indices = @transform_1, window_bounds = array<i64: 1024, 512>}, {transform_indices = @transform_2, window_bounds = array<i64: 512, 128>}, {pipeline_mode = #tpu.pipeline_mode<synchronous>, transform_indices = @transform_3, window_bounds = array<i64: 512, 512>}, {transform_indices = @transform_4, window_bounds = array<i64: 8, 1>}, {transform_indices = @transform_5, window_bounds = array<i64: 8, 128>}, {transform_indices = @transform_6, window_bounds = array<i64: 8, 512>}]} {
    %c0_i32 = arith.constant 0 : i32
    %0 = arith.cmpi eq, %arg1, %c0_i32 : i32
    %1 = arith.extui %0 : i1 to i32
    %c0_i32_0 = arith.constant 0 : i32
    %2 = arith.cmpi ne, %1, %c0_i32_0 : i32
    scf.if %2 {
      %c0_11 = arith.constant 0 : index
      %c0_12 = arith.constant 0 : index
      %20 = vector.load %arg2[%c0_11, %c0_12] : memref<8x1024xbf16, #tpu.memory_space<vmem>>, vector<8x1024xbf16>
      %c0_13 = arith.constant 0 : index
      %c0_14 = arith.constant 0 : index
      %21 = vector.load %arg3[%c0_13, %c0_14] : memref<1024x512xbf16, #tpu.memory_space<vmem>>, vector<1024x512xbf16>
      %cst_15 = arith.constant dense<0.000000e+00> : vector<8x512xf32>
      %22 = tpu.matmul %20, %21, %cst_15 {dimension_numbers = #tpu.dot_dimension_numbers<[1], [0], [0], [1], [0, 0, 1, 1], [], []>} : vector<8x1024xbf16>, vector<1024x512xbf16>, vector<8x512xf32> -> vector<8x512xf32>
      %23 = arith.mulf %22, %22 : vector<8x512xf32>
      %cst_16 = arith.constant dense<0.000000e+00> : vector<8xf32>
      %24 = vector.multi_reduction <add>, %23, %cst_16 [1] : vector<8x512xf32> to vector<8xf32>
      %25 = vector.shape_cast %24 : vector<8xf32> to vector<8x1xf32>
      %cst_17 = arith.constant 9.99999996E-13 : f32
      %26 = vector.broadcast %cst_17 : f32 to vector<8x1xf32>
      %27 = arith.addf %25, %26 : vector<8x1xf32>
      %28 = math.rsqrt %27 : vector<8x1xf32>
      %cst_18 = arith.constant 6.400000e+01 : f32
      %29 = vector.broadcast %cst_18 : f32 to vector<8x1xf32>
      %30 = arith.mulf %29, %28 : vector<8x1xf32>
      %c0_19 = arith.constant 0 : index
      %c0_20 = arith.constant 0 : index
      %31 = vector.load %arg10[%c0_19, %c0_20] : memref<8x1xf32, #tpu.memory_space<vmem>>, vector<8x1xf32>
      tpu.vector_store %arg10[%c0_19, %c0_20], %30 {strides = array<i32>} : memref<8x1xf32, #tpu.memory_space<vmem>>, vector<8x1xf32>,
      %32 = arith.truncf %22 : vector<8x512xf32> to vector<8x512xbf16>
      %c0_21 = arith.constant 0 : index
      %c0_22 = arith.constant 0 : index
      %33 = vector.load %arg9[%c0_21, %c0_22] : memref<8x512xbf16, #tpu.memory_space<vmem>>, vector<8x512xbf16>
      tpu.vector_store %arg9[%c0_21, %c0_22], %32 {strides = array<i32>} : memref<8x512xbf16, #tpu.memory_space<vmem>>, vector<8x512xbf16>,
      %c0_23 = arith.constant 0 : index
      %c0_24 = arith.constant 0 : index
      %34 = vector.load %arg5[%c0_23, %c0_24] : memref<512x512xbf16, #tpu.memory_space<vmem>>, vector<512x512xbf16>
      %cst_25 = arith.constant dense<0.000000e+00> : vector<8x512xf32>
      %35 = tpu.matmul %32, %34, %cst_25 {dimension_numbers = #tpu.dot_dimension_numbers<[1], [0], [0], [1], [0, 0, 1, 1], [], []>} : vector<8x512xbf16>, vector<512x512xbf16>, vector<8x512xf32> -> vector<8x512xf32>
      %c0_26 = arith.constant 0 : index
      %c0_27 = arith.constant 0 : index
      %36 = vector.load %arg8[%c0_26, %c0_27] : memref<8x512xf32, #tpu.memory_space<vmem>>, vector<8x512xf32>
      tpu.vector_store %arg8[%c0_26, %c0_27], %35 {strides = array<i32>} : memref<8x512xf32, #tpu.memory_space<vmem>>, vector<8x512xf32>,
    } else {
    }
    %c0 = arith.constant 0 : index
    %c0_1 = arith.constant 0 : index
    %3 = vector.load %arg9[%c0, %c0_1] : memref<8x512xbf16, #tpu.memory_space<vmem>>, vector<8x512xbf16>
    %c0_2 = arith.constant 0 : index
    %c0_3 = arith.constant 0 : index
    %4 = vector.load %arg4[%c0_2, %c0_3] : memref<512x128xbf16, #tpu.memory_space<vmem>>, vector<512x128xbf16>
    %cst = arith.constant dense<0.000000e+00> : vector<8x128xf32>
    %5 = tpu.matmul %3, %4, %cst {dimension_numbers = #tpu.dot_dimension_numbers<[1], [0], [0], [1], [0, 0, 1, 1], [], []>} : vector<8x512xbf16>, vector<512x128xbf16>, vector<8x128xf32> -> vector<8x128xf32>
    %c0_4 = arith.constant 0 : index
    %c0_5 = arith.constant 0 : index
    %6 = vector.load %arg10[%c0_4, %c0_5] : memref<8x1xf32, #tpu.memory_space<vmem>>, vector<8x1xf32>
    %7 = vector.broadcast %6 : vector<8x1xf32> to vector<8x128xf32>
    %8 = arith.mulf %5, %7 : vector<8x128xf32>
    %c128_i32 = arith.constant 128 : i32
    %9 = arith.muli %arg1, %c128_i32 : i32
    %10 = tpu.iota {dimensions = array<i32: 1>} : vector<8x128xi32>
    %11 = vector.broadcast %9 : i32 to vector<8x128xi32>
    %12 = arith.addi %11, %10 : vector<8x128xi32>
    %c0_6 = arith.constant 0 : index
    %c0_7 = arith.constant 0 : index
    %13 = vector.load %arg6[%c0_6, %c0_7] : memref<8x1xi32, #tpu.memory_space<vmem>>, vector<8x1xi32>
    %14 = vector.broadcast %13 : vector<8x1xi32> to vector<8x128xi32>
    %15 = arith.cmpi eq, %12, %14 : vector<8x128xi32>
    %cst_8 = arith.constant 2.240000e+01 : f32
    %16 = vector.broadcast %cst_8 : f32 to vector<8x128xf32>
    %17 = arith.subf %8, %16 : vector<8x128xf32>
    %18 = arith.select %15, %17, %8 : vector<8x128xi1>, vector<8x128xf32>
    %c0_9 = arith.constant 0 : index
    %c0_10 = arith.constant 0 : index
    %19 = vector.load %arg7[%c0_9, %c0_10] : memref<8x128xf32, #tpu.memory_space<vmem>>, vector<8x128xf32>
    tpu.vector_store %arg7[%c0_9, %c0_10], %18 {strides = array<i32>} : memref<8x128xf32, #tpu.memory_space<vmem>>, vector<8x128xf32>,
    return
  }
  func.func @transform_0(%arg0: i32, %arg1: i32) -> (i32, i32) {
    %c0_i32 = arith.constant 0 : i32
    %c0_i32_0 = arith.constant 0 : i32
    return %arg0, %c0_i32 : i32, i32
  }
  func.func @transform_1(%arg0: i32, %arg1: i32) -> (i32, i32) {
    %c0_i32 = arith.constant 0 : i32
    %c0_i32_0 = arith.constant 0 : i32
    %c0_i32_1 = arith.constant 0 : i32
    return %c0_i32, %c0_i32_0 : i32, i32
  }
  func.func @transform_2(%arg0: i32, %arg1: i32) -> (i32, i32) {
    %c0_i32 = arith.constant 0 : i32
    %c0_i32_0 = arith.constant 0 : i32
    return %c0_i32, %arg1 : i32, i32
  }
  func.func @transform_3(%arg0: i32, %arg1: i32) -> (i32, i32) {
    %c0_i32 = arith.constant 0 : i32
    %c0_i32_0 = arith.constant 0 : i32
    %c0_i32_1 = arith.constant 0 : i32
    return %c0_i32, %c0_i32_0 : i32, i32
  }
  func.func @transform_4(%arg0: i32, %arg1: i32) -> (i32, i32) {
    %c0_i32 = arith.constant 0 : i32
    %c0_i32_0 = arith.constant 0 : i32
    return %arg0, %c0_i32 : i32, i32
  }
  func.func @transform_5(%arg0: i32, %arg1: i32) -> (i32, i32) {
    %c0_i32 = arith.constant 0 : i32
    return %arg0, %arg1 : i32, i32
  }
  func.func @transform_6(%arg0: i32, %arg1: i32) -> (i32, i32) {
    %c0_i32 = arith.constant 0 : i32
    %c0_i32_0 = arith.constant 0 : i32
    return %arg0, %c0_i32 : i32, i32
  }
}

</mosaic_0001>

<llo_original>
// kernel: face_model_forward.1
$region0: #{face_model_forward.1}
  #allocation0 [shape = 'u32[]', space=smem, size = 0x4, offset = 0x4, fixed_abs, tag = 'smem constant byte address 0x4 - core index']
  #allocation1 [shape = 'u32[72,128]{1,0:T(1,128)}', space=vmem, size = 0x9000, scoped, tag = 'internal scratch']
  #allocation2 [shape = 'bf16[8,512]{1,0:T(8,128)(2,1)}', space=vmem, size = 0x2000, scoped, tag = 'scratch operand']
  #allocation3 [shape = 'f32[8,1]{1,0:T(8,128)}', space=vmem, size = 0x1000, scoped, tag = 'scratch operand']
  %s0 = inlined_call_operand.vmem [shape: bf16[8,1024], index: 0, kind: input, shape index: {}]
  %s1 = inlined_call_operand.hbm [shape: bf16[1024,512], index: 1, kind: input, shape index: {}]
  %s2 = inlined_call_operand.vmem [shape: bf16[512,128], index: 2, kind: input, shape index: {}]
  %s3 = inlined_call_operand.hbm [shape: bf16[512,512], index: 3, kind: input, shape index: {}]
  %s4 = inlined_call_operand.vmem [shape: s32[8,1], index: 4, kind: input, shape index: {}]
  %s5 = inlined_call_operand.vmem [shape: f32[8,128], index: 5, kind: output, shape index: {0}]
  %s6 = inlined_call_operand.vmem [shape: f32[8,512], index: 6, kind: output, shape index: {1}]
  %7 = xla_tuple %s5, %s6
  %s8 = sld [smem:[#allocation0]]
  $region50: #{face_model_forward.1} parent=0
    _
  %s10 = ssub.s32 1, %s8
  %s11 = scalar_select 0, %s10, %s8
  $region1: #{face_model_forward.1} parent=0
    #allocation4 [shape = 'u8[1048576]{0}', space=vmem, size = 0x100000, scoped, tag = 'input window, operand 1, single buffered']
    #allocation5 [shape = 's32[1]{0}', space=sflag, size = 0x4, scoped, tag = 'scoped memory for face_model_forward.1']
    #allocation6 [shape = 'u8[524288]{0}', space=vmem, size = 0x80000, scoped, tag = 'input window, operand 3, single buffered']
    #allocation7 [shape = 's32[1]{0}', space=sflag, size = 0x4, scoped, tag = 'scoped memory for face_model_forward.1']
    %12 = vsyncpa [#allocation5], 0
    %13 = vsyncpa [#allocation7], 0
    // Predicated region
    $region2: #{face_model_forward.1} parent=1 // pred_check
      _
    $region3: #{face_model_forward.1} parent=1 // pred_check_branch
      %15 = sbr.rel (0) target = $region5
    $region4: #{face_model_forward.1} parent=1 // pred_region
      _
    $region5: #{face_model_forward.1} parent=1 // pred_fallthru
      _
    // Predicated region
    $region6: #{face_model_forward.1} parent=1 // pred_check
      _
    $region7: #{face_model_forward.1} parent=1 // pred_check_branch
      %17 = sbr.rel (0) target = $region9
    $region8: #{face_model_forward.1} parent=1 // pred_region
      %19 = vsyncadd [#allocation5], 0
      %s20 = sshll.u32 %s1, 4
      %s21 = int_to_ptr.hbm [resolvable:$true] %s20
      %s22 = sshll.u32 [#allocation4], 4
      %s23 = int_to_ptr.vmem [resolvable:$true] %s22
      %28 = dma.hbm_to_vmem [thread:$0]  %s21, 32768, %s23, [#allocation5], 256, 256, 16
    $region9: #{face_model_forward.1} parent=1 // pred_fallthru
      _
    // Predicated region
    $region10: #{face_model_forward.1} parent=1 // pred_check
      _
    $region11: #{face_model_forward.1} parent=1 // pred_check_branch
      %30 = sbr.rel (0) target = $region13
    $region12: #{face_model_forward.1} parent=1 // pred_region
      _
    $region13: #{face_model_forward.1} parent=1 // pred_fallthru
      _
    // Predicated region
    $region14: #{face_model_forward.1} parent=1 // pred_check
      _
    $region15: #{face_model_forward.1} parent=1 // pred_check_branch
      %32 = sbr.rel (0) target = $region17
    $region16: #{face_model_forward.1} parent=1 // pred_region
      %34 = vsyncadd [#allocation7], 0
      %s35 = sshll.u32 %s3, 4
      %s36 = int_to_ptr.hbm [resolvable:$true] %s35
      %s37 = sshll.u32 [#allocation6], 4
      %s38 = int_to_ptr.vmem [resolvable:$true] %s37
      %43 = dma.hbm_to_vmem [thread:$0]  %s36, 16384, %s38, [#allocation7], 256, 256, 16
    $region17: #{face_model_forward.1} parent=1 // pred_fallthru
      _
    // Predicated region
    $region18: #{face_model_forward.1} parent=1 // pred_check
      _
    $region19: #{face_model_forward.1} parent=1 // pred_check_branch
      %45 = sbr.rel (0) target = $region21
    $region20: #{face_model_forward.1} parent=1 // pred_region
      _
    $region21: #{face_model_forward.1} parent=1 // pred_fallthru
      _
    // Predicated region
    $region22: #{face_model_forward.1} parent=1 // pred_check
      _
    $region23: #{face_model_forward.1} parent=1 // pred_check_branch
      %47 = sbr.rel (0) target = $region25
    $region24: #{face_model_forward.1} parent=1 // pred_region
      %49 = dma.done [#allocation5], 32768
    $region25: #{face_model_forward.1} parent=1 // pred_fallthru
      _
    // Predicated region
    $region26: #{face_model_forward.1} parent=1 // pred_check
      _
    $region27: #{face_model_forward.1} parent=1 // pred_check_branch
      %51 = sbr.rel (0) target = $region29
    $region28: #{face_model_forward.1} parent=1 // pred_region
      %53 = dma.done [#allocation7], 16384
    $region29: #{face_model_forward.1} parent=1 // pred_fallthru
      _
    %p54 = scmp.eq.s32.totalorder 0, 0
    // Predicated region
    $region30: #{face_model_forward.1} parent=1 // pred_check
      %p55 = pneg %p54
    $region31: #{face_model_forward.1} parent=1 // pred_check_branch
      %57 = sbr.rel (%p55) target = $region33
    $region32: #{face_model_forward.1} parent=1 // pred_region
      %v58 = vld [vmem:[%s0] sm:$0xff]
      %v59 = vld [vmem:[%s0 + $0x8] sm:$0xff]
      %v60 = vld [vmem:[%s0 + $0x10] sm:$0xff]
      %v61 = vld [vmem:[%s0 + $0x18] sm:$0xff]
      %v62 = vld [vmem:[#allocation4] sm:$0xff]
      %v63 = vld [vmem:[#allocation4 + $0x8] sm:$0xff]
      %v64 = vld [vmem:[#allocation4 + $0x10] sm:$0xff]
      %v65 = vld [vmem:[#allocation4 + $0x18] sm:$0xff]
      %v66 = vld [vmem:[#allocation4 + $0x20] sm:$0xff]
      %v67 = vld [vmem:[#allocation4 + $0x28] sm:$0xff]
      %v68 = vld [vmem:[#allocation4 + $0x30] sm:$0xff]
      %v69 = vld [vmem:[#allocation4 + $0x38] sm:$0xff]
      %v70 = vld [vmem:[#allocation4 + $0x40] sm:$0xff]
      %v71 = vld [vmem:[#allocation4 + $0x48] sm:$0xff]
      %v72 = vld [vmem:[#allocation4 + $0x50] sm:$0xff]
      %v73 = vld [vmem:[#allocation4 + $0x58] sm:$0xff]
      %v74 = vld [vmem:[#allocation4 + $0x60] sm:$0xff]
      %v75 = vld [vmem:[#allocation4 + $0x68] sm:$0xff]
      %v76 = vld [vmem:[#allocation4 + $0x70] sm:$0xff]
      %v77 = vld [vmem:[#allocation4 + $0x78] sm:$0xff]
      %v78 = vld [vmem:[#allocation4 + $0x80] sm:$0xff]
      %v79 = vld [vmem:[#allocation4 + $0x88] sm:$0xff]
      %v80 = vld [vmem:[#allocation4 + $0x90] sm:$0xff]
      %v81 = vld [vmem:[#allocation4 + $0x98] sm:$0xff]
      %v82 = vld [vmem:[#allocation4 + $0xa0] sm:$0xff]
      %v83 = vld [vmem:[#allocation4 + $0xa8] sm:$0xff]
      %v84 = vld [vmem:[#allocation4 + $0xb0] sm:$0xff]
      %v85 = vld [vmem:[#allocation4 + $0xb8] sm:$0xff]
      %v86 = vld [vmem:[#allocation4 + $0xc0] sm:$0xff]
      %v87 = vld [vmem:[#allocation4 + $0xc8] sm:$0xff]
      %v88 = vld [vmem:[#allocation4 + $0xd0] sm:$0xff]
      %v89 = vld [vmem:[#allocation4 + $0xd8] sm:$0xff]
      %v90 = vld [vmem:[#allocation4 + $0xe0] sm:$0xff]
      %v91 = vld [vmem:[#allocation4 + $0xe8] sm:$0xff]
      %v92 = vld [vmem:[#allocation4 + $0xf0] sm:$0xff]
      %v93 = vld [vmem:[#allocation4 + $0xf8] sm:$0xff]
      %v94 = vld [vmem:[#allocation4 + $0x100] sm:$0xff]
      %v95 = vld [vmem:[#allocation4 + $0x108] sm:$0xff]
      %v96 = vld [vmem:[#allocation4 + $0x110] sm:$0xff]
      %v97 = vld [vmem:[#allocation4 + $0x118] sm:$0xff]
      %v98 = vld [vmem:[#allocation4 + $0x120] sm:$0xff]
      %v99 = vld [vmem:[#allocation4 + $0x128] sm:$0xff]
      %v100 = vld [vmem:[#allocation4 + $0x130] sm:$0xff]
      %v101 = vld [vmem:[#allocation4 + $0x138] sm:$0xff]
      %v102 = vld [vmem:[#allocation4 + $0x140] sm:$0xff]
      %v103 = vld [vmem:[#allocation4 + $0x148] sm:$0xff]
      %v104 = vld [vmem:[#allocation4 + $0x150] sm:$0xff]
      %v105 = vld [vmem:[#allocation4 + $0x158] sm:$0xff]
      %v106 = vld [vmem:[#allocation4 + $0x160] sm:$0xff]
      %v107 = vld [vmem:[#allocation4 + $0x168] sm:$0xff]
      %v108 = vld [vmem:[#allocation4 + $0x170] sm:$0xff]
      %v109 = vld [vmem:[#allocation4 + $0x178] sm:$0xff]
      %v110 = vld [vmem:[#allocation4 + $0x180] sm:$0xff]
      %v111 = vld [vmem:[#allocation4 + $0x188] sm:$0xff]
      %v112 = vld [vmem:[#allocation4 + $0x190] sm:$0xff]
      %v113 = vld [vmem:[#allocation4 + $0x198] sm:$0xff]
      %v114 = vld [vmem:[#allocation4 + $0x1a0] sm:$0xff]
      %v115 = vld [vmem:[#allocation4 + $0x1a8] sm:$0xff]
      %v116 = vld [vmem:[#allocation4 + $0x1b0] sm:$0xff]
      %v117 = vld [vmem:[#allocation4 + $0x1b8] sm:$0xff]
      %v118 = vld [vmem:[#allocation4 + $0x1c0] sm:$0xff]
      %v119 = vld [vmem:[#allocation4 + $0x1c8] sm:$0xff]
      %v120 = vld [vmem:[#allocation4 + $0x1d0] sm:$0xff]
      %v121 = vld [vmem:[#allocation4 + $0x1d8] sm:$0xff]
      %v122 = vld [vmem:[#allocation4 + $0x1e0] sm:$0xff]
      %v123 = vld [vmem:[#allocation4 + $0x1e8] sm:$0xff]
      %v124 = vld [vmem:[#allocation4 + $0x1f0] sm:$0xff]
      %v125 = vld [vmem:[#allocation4 + $0x1f8] sm:$0xff]
      %v126 = vld [vmem:[#allocation4 + $0x200] sm:$0xff]
      %v127 = vld [vmem:[#allocation4 + $0x208] sm:$0xff]
      %v128 = vld [vmem:[#allocation4 + $0x210] sm:$0xff]
      %v129 = vld [vmem:[#allocation4 + $0x218] sm:$0xff]
      %v130 = vld [vmem:[#allocation4 + $0x220] sm:$0xff]
      %v131 = vld [vmem:[#allocation4 + $0x228] sm:$0xff]
      %v132 = vld [vmem:[#allocation4 + $0x230] sm:$0xff]
      %v133 = vld [vmem:[#allocation4 + $0x238] sm:$0xff]
      %v134 = vld [vmem:[#allocation4 + $0x240] sm:$0xff]
      %v135 = vld [vmem:[#allocation4 + $0x248] sm:$0xff]
      %v136 = vld [vmem:[#allocation4 + $0x250] sm:$0xff]
      %v137 = vld [vmem:[#allocation4 + $0x258] sm:$0xff]
      %v138 = vld [vmem:[#allocation4 + $0x260] sm:$0xff]
      %v139 = vld [vmem:[#allocation4 + $0x268] sm:$0xff]
      %v140 = vld [vmem:[#allocation4 + $0x270] sm:$0xff]
      %v141 = vld [vmem:[#allocation4 + $0x278] sm:$0xff]
      %v142 = vld [vmem:[#allocation4 + $0x280] sm:$0xff]
      %v143 = vld [vmem:[#allocation4 + $0x288] sm:$0xff]
      %v144 = vld [vmem:[#allocation4 + $0x290] sm:$0xff]
      %v145 = vld [vmem:[#allocation4 + $0x298] sm:$0xff]
      %v146 = vld [vmem:[#allocation4 + $0x2a0] sm:$0xff]
      %v147 = vld [vmem:[#allocation4 + $0x2a8] sm:$0xff]
      %v148 = vld [vmem:[#allocation4 + $0x2b0] sm:$0xff]
      %v149 = vld [vmem:[#allocation4 + $0x2b8] sm:$0xff]
      %v150 = vld [vmem:[#allocation4 + $0x2c0] sm:$0xff]
      %v151 = vld [vmem:[#allocation4 + $0x2c8] sm:$0xff]
      %v152 = vld [vmem:[#allocation4 + $0x2d0] sm:$0xff]
      %v153 = vld [vmem:[#allocation4 + $0x2d8] sm:$0xff]
      %v154 = vld [vmem:[#allocation4 + $0x2e0] sm:$0xff]
      %v155 = vld [vmem:[#allocation4 + $0x2e8] sm:$0xff]
      %v156 = vld [vmem:[#allocation4 + $0x2f0] sm:$0xff]
      %v157 = vld [vmem:[#allocation4 + $0x2f8] sm:$0xff]
      %v158 = vld [vmem:[#allocation4 + $0x300] sm:$0xff]
      %v159 = vld [vmem:[#allocation4 + $0x308] sm:$0xff]
      %v160 = vld [vmem:[#allocation4 + $0x310] sm:$0xff]
      %v161 = vld [vmem:[#allocation4 + $0x318] sm:$0xff]
      %v162 = vld [vmem:[#allocation4 + $0x320] sm:$0xff]
      %v163 = vld [vmem:[#allocation4 + $0x328] sm:$0xff]
      %v164 = vld [vmem:[#allocation4 + $0x330] sm:$0xff]
      %v165 = vld [vmem:[#allocation4 + $0x338] sm:$0xff]
      %v166 = vld [vmem:[#allocation4 + $0x340] sm:$0xff]
      %v167 = vld [vmem:[#allocation4 + $0x348] sm:$0xff]
      %v168 = vld [vmem:[#allocation4 + $0x350] sm:$0xff]
      %v169 = vld [vmem:[#allocation4 + $0x358] sm:$0xff]
      %v170 = vld [vmem:[#allocation4 + $0x360] sm:$0xff]
      %v171 = vld [vmem:[#allocation4 + $0x368] sm:$0xff]
      %v172 = vld [vmem:[#allocation4 + $0x370] sm:$0xff]
      %v173 = vld [vmem:[#allocation4 + $0x378] sm:$0xff]
      %v174 = vld [vmem:[#allocation4 + $0x380] sm:$0xff]
      %v175 = vld [vmem:[#allocation4 + $0x388] sm:$0xff]
      %v176 = vld [vmem:[#allocation4 + $0x390] sm:$0xff]
      %v177 = vld [vmem:[#allocation4 + $0x398] sm:$0xff]
      %v178 = vld [vmem:[#allocation4 + $0x3a0] sm:$0xff]
      %v179 = vld [vmem:[#allocation4 + $0x3a8] sm:$0xff]
      %v180 = vld [vmem:[#allocation4 + $0x3b0] sm:$0xff]
      %v181 = vld [vmem:[#allocation4 + $0x3b8] sm:$0xff]
      %v182 = vld [vmem:[#allocation4 + $0x3c0] sm:$0xff]
      %v183 = vld [vmem:[#allocation4 + $0x3c8] sm:$0xff]
      %v184 = vld [vmem:[#allocation4 + $0x3d0] sm:$0xff]
      %v185 = vld [vmem:[#allocation4 + $0x3d8] sm:$0xff]
      %v186 = vld [vmem:[#allocation4 + $0x3e0] sm:$0xff]
      %v187 = vld [vmem:[#allocation4 + $0x3e8] sm:$0xff]
      %v188 = vld [vmem:[#allocation4 + $0x3f0] sm:$0xff]
      %v189 = vld [vmem:[#allocation4 + $0x3f8] sm:$0xff]
      %v190 = vld [vmem:[#allocation4 + $0x400] sm:$0xff]
      %v191 = vld [vmem:[#allocation4 + $0x408] sm:$0xff]
      %v192 = vld [vmem:[#allocation4 + $0x410] sm:$0xff]
      %v193 = vld [vmem:[#allocation4 + $0x418] sm:$0xff]
      %v194 = vld [vmem:[#allocation4 + $0x420] sm:$0xff]
      %v195 = vld [vmem:[#allocation4 + $0x428] sm:$0xff]
      %v196 = vld [vmem:[#allocation4 + $0x430] sm:$0xff]
      %v197 = vld [vmem:[#allocation4 + $0x438] sm:$0xff]
      %v198 = vld [vmem:[#allocation4 + $0x440] sm:$0xff]
      %v199 = vld [vmem:[#allocation4 + $0x448] sm:$0xff]
      %v200 = vld [vmem:[#allocation4 + $0x450] sm:$0xff]
      %v201 = vld [vmem:[#allocation4 + $0x458] sm:$0xff]
      %v202 = vld [vmem:[#allocation4 + $0x460] sm:$0xff]
      %v203 = vld [vmem:[#allocation4 + $0x468] sm:$0xff]
      %v204 = vld [vmem:[#allocation4 + $0x470] sm:$0xff]
      %v205 = vld [vmem:[#allocation4 + $0x478] sm:$0xff]
      %v206 = vld [vmem:[#allocation4 + $0x480] sm:$0xff]
      %v207 = vld [vmem:[#allocation4 + $0x488] sm:$0xff]
      %v208 = vld [vmem:[#allocation4 + $0x490] sm:$0xff]
      %v209 = vld [vmem:[#allocation4 + $0x498] sm:$0xff]
      %v210 = vld [vmem:[#allocation4 + $0x4a0] sm:$0xff]
      %v211 = vld [vmem:[#allocation4 + $0x4a8] sm:$0xff]
      %v212 = vld [vmem:[#allocation4 + $0x4b0] sm:$0xff]
      %v213 = vld [vmem:[#allocation4 + $0x4b8] sm:$0xff]
      %v214 = vld [vmem:[#allocation4 + $0x4c0] sm:$0xff]
      %v215 = vld [vmem:[#allocation4 + $0x4c8] sm:$0xff]
      %v216 = vld [vmem:[#allocation4 + $0x4d0] sm:$0xff]
      %v217 = vld [vmem:[#allocation4 + $0x4d8] sm:$0xff]
      %v218 = vld [vmem:[#allocation4 + $0x4e0] sm:$0xff]
      %v219 = vld [vmem:[#allocation4 + $0x4e8] sm:$0xff]
      %v220 = vld [vmem:[#allocation4 + $0x4f0] sm:$0xff]
      %v221 = vld [vmem:[#allocation4 + $0x4f8] sm:$0xff]
      %v222 = vld [vmem:[#allocation4 + $0x500] sm:$0xff]
      %v223 = vld [vmem:[#allocation4 + $0x508] sm:$0xff]
      %v224 = vld [vmem:[#allocation4 + $0x510] sm:$0xff]
      %v225 = vld [vmem:[#allocation4 + $0x518] sm:$0xff]
      %v226 = vld [vmem:[#allocation4 + $0x520] sm:$0xff]
      %v227 = vld [vmem:[#allocation4 + $0x528] sm:$0xff]
      %v228 = vld [vmem:[#allocation4 + $0x530] sm:$0xff]
      %v229 = vld [vmem:[#allocation4 + $0x538] sm:$0xff]
      %v230 = vld [vmem:[#allocation4 + $0x540] sm:$0xff]
      %v231 = vld [vmem:[#allocation4 + $0x548] sm:$0xff]
      %v232 = vld [vmem:[#allocation4 + $0x550] sm:$0xff]
      %v233 = vld [vmem:[#allocation4 + $0x558] sm:$0xff]
      %v234 = vld [vmem:[#allocation4 + $0x560] sm:$0xff]
      %v235 = vld [vmem:[#allocation4 + $0x568] sm:$0xff]
      %v236 = vld [vmem:[#allocation4 + $0x570] sm:$0xff]
      %v237 = vld [vmem:[#allocation4 + $0x578] sm:$0xff]
      %v238 = vld [vmem:[#allocation4 + $0x580] sm:$0xff]
      %v239 = vld [vmem:[#allocation4 + $0x588] sm:$0xff]
      %v240 = vld [vmem:[#allocation4 + $0x590] sm:$0xff]
      %v241 = vld [vmem:[#allocation4 + $0x598] sm:$0xff]
      %v242 = vld [vmem:[#allocation4 + $0x5a0] sm:$0xff]
      %v243 = vld [vmem:[#allocation4 + $0x5a8] sm:$0xff]
      %v244 = vld [vmem:[#allocation4 + $0x5b0] sm:$0xff]
      %v245 = vld [vmem:[#allocation4 + $0x5b8] sm:$0xff]
      %v246 = vld [vmem:[#allocation4 + $0x5c0] sm:$0xff]
      %v247 = vld [vmem:[#allocation4 + $0x5c8] sm:$0xff]
      %v248 = vld [vmem:[#allocation4 + $0x5d0] sm:$0xff]
      %v249 = vld [vmem:[#allocation4 + $0x5d8] sm:$0xff]
      %v250 = vld [vmem:[#allocation4 + $0x5e0] sm:$0xff]
      %v251 = vld [vmem:[#allocation4 + $0x5e8] sm:$0xff]
      %v252 = vld [vmem:[#allocation4 + $0x5f0] sm:$0xff]
      %v253 = vld [vmem:[#allocation4 + $0x5f8] sm:$0xff]
      %v254 = vld [vmem:[#allocation4 + $0x600] sm:$0xff]
      %v255 = vld [vmem:[#allocation4 + $0x608] sm:$0xff]
      %v256 = vld [vmem:[#allocation4 + $0x610] sm:$0xff]
      %v257 = vld [vmem:[#allocation4 + $0x618] sm:$0xff]
      %v258 = vld [vmem:[#allocation4 + $0x620] sm:$0xff]
      %v259 = vld [vmem:[#allocation4 + $0x628] sm:$0xff]
      %v260 = vld [vmem:[#allocation4 + $0x630] sm:$0xff]
      %v261 = vld [vmem:[#allocation4 + $0x638] sm:$0xff]
      %v262 = vld [vmem:[#allocation4 + $0x640] sm:$0xff]
      %v263 = vld [vmem:[#allocation4 + $0x648] sm:$0xff]
      %v264 = vld [vmem:[#allocation4 + $0x650] sm:$0xff]
      %v265 = vld [vmem:[#allocation4 + $0x658] sm:$0xff]
      %v266 = vld [vmem:[#allocation4 + $0x660] sm:$0xff]
      %v267 = vld [vmem:[#allocation4 + $0x668] sm:$0xff]
      %v268 = vld [vmem:[#allocation4 + $0x670] sm:$0xff]
      %v269 = vld [vmem:[#allocation4 + $0x678] sm:$0xff]
      %v270 = vld [vmem:[#allocation4 + $0x680] sm:$0xff]
      %v271 = vld [vmem:[#allocation4 + $0x688] sm:$0xff]
      %v272 = vld [vmem:[#allocation4 + $0x690] sm:$0xff]
      %v273 = vld [vmem:[#allocation4 + $0x698] sm:$0xff]
      %v274 = vld [vmem:[#allocation4 + $0x6a0] sm:$0xff]
      %v275 = vld [vmem:[#allocation4 + $0x6a8] sm:$0xff]
      %v276 = vld [vmem:[#allocation4 + $0x6b0] sm:$0xff]
      %v277 = vld [vmem:[#allocation4 + $0x6b8] sm:$0xff]
      %v278 = vld [vmem:[#allocation4 + $0x6c0] sm:$0xff]
      %v279 = vld [vmem:[#allocation4 + $0x6c8] sm:$0xff]
      %v280 = vld [vmem:[#allocation4 + $0x6d0] sm:$0xff]
      %v281 = vld [vmem:[#allocation4 + $0x6d8] sm:$0xff]
      %v282 = vld [vmem:[#allocation4 + $0x6e0] sm:$0xff]
      %v283 = vld [vmem:[#allocation4 + $0x6e8] sm:$0xff]
      %v284 = vld [vmem:[#allocation4 + $0x6f0] sm:$0xff]
      %v285 = vld [vmem:[#allocation4 + $0x6f8] sm:$0xff]
      %v286 = vld [vmem:[#allocation4 + $0x700] sm:$0xff]
      %v287 = vld [vmem:[#allocation4 + $0x708] sm:$0xff]
      %v288 = vld [vmem:[#allocation4 + $0x710] sm:$0xff]
      %v289 = vld [vmem:[#allocation4 + $0x718] sm:$0xff]
      %v290 = vld [vmem:[#allocation4 + $0x720] sm:$0xff]
      %v291 = vld [vmem:[#allocation4 + $0x728] sm:$0xff]
      %v292 = vld [vmem:[#allocation4 + $0x730] sm:$0xff]
      %v293 = vld [vmem:[#allocation4 + $0x738] sm:$0xff]
      %v294 = vld [vmem:[#allocation4 + $0x740] sm:$0xff]
      %v295 = vld [vmem:[#allocation4 + $0x748] sm:$0xff]
      %v296 = vld [vmem:[#allocation4 + $0x750] sm:$0xff]
      %v297 = vld [vmem:[#allocation4 + $0x758] sm:$0xff]
      %v298 = vld [vmem:[#allocation4 + $0x760] sm:$0xff]
      %v299 = vld [vmem:[#allocation4 + $0x768] sm:$0xff]
      %v300 = vld [vmem:[#allocation4 + $0x770] sm:$0xff]
      %v301 = vld [vmem:[#allocation4 + $0x778] sm:$0xff]
      %v302 = vld [vmem:[#allocation4 + $0x780] sm:$0xff]
      %v303 = vld [vmem:[#allocation4 + $0x788] sm:$0xff]
      %v304 = vld [vmem:[#allocation4 + $0x790] sm:$0xff]
      %v305 = vld [vmem:[#allocation4 + $0x798] sm:$0xff]
      %v306 = vld [vmem:[#allocation4 + $0x7a0] sm:$0xff]
      %v307 = vld [vmem:[#allocation4 + $0x7a8] sm:$0xff]
      %v308 = vld [vmem:[#allocation4 + $0x7b0] sm:$0xff]
      %v309 = vld [vmem:[#allocation4 + $0x7b8] sm:$0xff]
      %v310 = vld [vmem:[#allocation4 + $0x7c0] sm:$0xff]
      %v311 = vld [vmem:[#allocation4 + $0x7c8] sm:$0xff]
      %v312 = vld [vmem:[#allocation4 + $0x7d0] sm:$0xff]
      %v313 = vld [vmem:[#allocation4 + $0x7d8] sm:$0xff]
      %v314 = vld [vmem:[#allocation4 + $0x7e0] sm:$0xff]
      %v315 = vld [vmem:[#allocation4 + $0x7e8] sm:$0xff]
      %v316 = vld [vmem:[#allocation4 + $0x7f0] sm:$0xff]
      %v317 = vld [vmem:[#allocation4 + $0x7f8] sm:$0xff]
      %v322 = vunpack.c.l.b16 %v58
      %v323 = vunpack.c.h.b16 %v58
      %v324 = vunpack.c.l.b16 %v59
      %v325 = vunpack.c.h.b16 %v59
      %v326 = vunpack.c.l.b16 %v60
      %v327 = vunpack.c.h.b16 %v60
      %v328 = vunpack.c.l.b16 %v61
      %v329 = vunpack.c.h.b16 %v61
      %v330 = vpack.c.b16 %v322, %v322
      %v331 = vpack.c.b16 %v323, %v323
      %v332 = vpack.c.b16 %v324, %v324
      %v333 = vpack.c.b16 %v325, %v325
      %v334 = vpack.c.b16 %v326, %v326
      %v335 = vpack.c.b16 %v327, %v327
      %v336 = vpack.c.b16 %v328, %v328
      %v337 = vpack.c.b16 %v329, %v329
      %v602 = vunpack.c.l.b16 %v62
      %v603 = vunpack.c.h.b16 %v62
      %v604 = vunpack.c.l.b16 %v63
      %v605 = vunpack.c.h.b16 %v63
      %v606 = vunpack.c.l.b16 %v64
      %v607 = vunpack.c.h.b16 %v64
      %v608 = vunpack.c.l.b16 %v65
      %v609 = vunpack.c.h.b16 %v65
      %v610 = vunpack.c.l.b16 %v66
      %v611 = vunpack.c.h.b16 %v66
      %v612 = vunpack.c.l.b16 %v67
      %v613 = vunpack.c.h.b16 %v67
      %v614 = vunpack.c.l.b16 %v68
      %v615 = vunpack.c.h.b16 %v68
      %v616 = vunpack.c.l.b16 %v69
      %v617 = vunpack.c.h.b16 %v69
      %v618 = vunpack.c.l.b16 %v70
      %v619 = vunpack.c.h.b16 %v70
      %v620 = vunpack.c.l.b16 %v71
      %v621 = vunpack.c.h.b16 %v71
      %v622 = vunpack.c.l.b16 %v72
      %v623 = vunpack.c.h.b16 %v72
      %v624 = vunpack.c.l.b16 %v73
      %v625 = vunpack.c.h.b16 %v73
      %v626 = vunpack.c.l.b16 %v74
      %v627 = vunpack.c.h.b16 %v74
      %v628 = vunpack.c.l.b16 %v75
      %v629 = vunpack.c.h.b16 %v75
      %v630 = vunpack.c.l.b16 %v76
      %v631 = vunpack.c.h.b16 %v76
      %v632 = vunpack.c.l.b16 %v77
      %v633 = vunpack.c.h.b16 %v77
      %v634 = vunpack.c.l.b16 %v78
      %v635 = vunpack.c.h.b16 %v78
      %v636 = vunpack.c.l.b16 %v79
      %v637 = vunpack.c.h.b16 %v79
      %v638 = vunpack.c.l.b16 %v80
      %v639 = vunpack.c.h.b16 %v80
      %v640 = vunpack.c.l.b16 %v81
      %v641 = vunpack.c.h.b16 %v81
      %v642 = vunpack.c.l.b16 %v82
      %v643 = vunpack.c.h.b16 %v82
      %v644 = vunpack.c.l.b16 %v83
      %v645 = vunpack.c.h.b16 %v83
      %v646 = vunpack.c.l.b16 %v84
      %v647 = vunpack.c.h.b16 %v84
      %v648 = vunpack.c.l.b16 %v85
      %v649 = vunpack.c.h.b16 %v85
      %v650 = vunpack.c.l.b16 %v86
      %v651 = vunpack.c.h.b16 %v86
      %v652 = vunpack.c.l.b16 %v87
      %v653 = vunpack.c.h.b16 %v87
      %v654 = vunpack.c.l.b16 %v88
      %v655 = vunpack.c.h.b16 %v88
      %v656 = vunpack.c.l.b16 %v89
      %v657 = vunpack.c.h.b16 %v89
      %v658 = vunpack.c.l.b16 %v90
      %v659 = vunpack.c.h.b16 %v90
      %v660 = vunpack.c.l.b16 %v91
      %v661 = vunpack.c.h.b16 %v91
      %v662 = vunpack.c.l.b16 %v92
      %v663 = vunpack.c.h.b16 %v92
      %v664 = vunpack.c.l.b16 %v93
      %v665 = vunpack.c.h.b16 %v93
      %v666 = vunpack.c.l.b16 %v94
      %v667 = vunpack.c.h.b16 %v94
      %v668 = vunpack.c.l.b16 %v95
      %v669 = vunpack.c.h.b16 %v95
      %v670 = vunpack.c.l.b16 %v96
      %v671 = vunpack.c.h.b16 %v96
      %v672 = vunpack.c.l.b16 %v97
      %v673 = vunpack.c.h.b16 %v97
      %v674 = vunpack.c.l.b16 %v98
      %v675 = vunpack.c.h.b16 %v98
      %v676 = vunpack.c.l.b16 %v99
      %v677 = vunpack.c.h.b16 %v99
      %v678 = vunpack.c.l.b16 %v100
      %v679 = vunpack.c.h.b16 %v100
      %v680 = vunpack.c.l.b16 %v101
      %v681 = vunpack.c.h.b16 %v101
      %v682 = vunpack.c.l.b16 %v102
      %v683 = vunpack.c.h.b16 %v102
      %v684 = vunpack.c.l.b16 %v103
      %v685 = vunpack.c.h.b16 %v103
      %v686 = vunpack.c.l.b16 %v104
      %v687 = vunpack.c.h.b16 %v104
      %v688 = vunpack.c.l.b16 %v105
      %v689 = vunpack.c.h.b16 %v105
      %v690 = vunpack.c.l.b16 %v106
      %v691 = vunpack.c.h.b16 %v106
      %v692 = vunpack.c.l.b16 %v107
      %v693 = vunpack.c.h.b16 %v107
      %v694 = vunpack.c.l.b16 %v108
      %v695 = vunpack.c.h.b16 %v108
      %v696 = vunpack.c.l.b16 %v109
      %v697 = vunpack.c.h.b16 %v109
      %v698 = vunpack.c.l.b16 %v110
      %v699 = vunpack.c.h.b16 %v110
      %v700 = vunpack.c.l.b16 %v111
      %v701 = vunpack.c.h.b16 %v111
      %v702 = vunpack.c.l.b16 %v112
      %v703 = vunpack.c.h.b16 %v112
      %v704 = vunpack.c.l.b16 %v113
      %v705 = vunpack.c.h.b16 %v113
      %v706 = vunpack.c.l.b16 %v114
      %v707 = vunpack.c.h.b16 %v114
      %v708 = vunpack.c.l.b16 %v115
      %v709 = vunpack.c.h.b16 %v115
      %v710 = vunpack.c.l.b16 %v116
      %v711 = vunpack.c.h.b16 %v116
      %v712 = vunpack.c.l.b16 %v117
      %v713 = vunpack.c.h.b16 %v117
      %v714 = vunpack.c.l.b16 %v118
      %v715 = vunpack.c.h.b16 %v118
      %v716 = vunpack.c.l.b16 %v119
      %v717 = vunpack.c.h.b16 %v119
      %v718 = vunpack.c.l.b16 %v120
      %v719 = vunpack.c.h.b16 %v120
      %v720 = vunpack.c.l.b16 %v121
      %v721 = vunpack.c.h.b16 %v121
      %v722 = vunpack.c.l.b16 %v122
      %v723 = vunpack.c.h.b16 %v122
      %v724 = vunpack.c.l.b16 %v123
      %v725 = vunpack.c.h.b16 %v123
      %v726 = vunpack.c.l.b16 %v124
      %v727 = vunpack.c.h.b16 %v124
      %v728 = vunpack.c.l.b16 %v125
      %v729 = vunpack.c.h.b16 %v125
      %v730 = vunpack.c.l.b16 %v126
      %v731 = vunpack.c.h.b16 %v126
      %v732 = vunpack.c.l.b16 %v127
      %v733 = vunpack.c.h.b16 %v127
      %v734 = vunpack.c.l.b16 %v128
      %v735 = vunpack.c.h.b16 %v128
      %v736 = vunpack.c.l.b16 %v129
      %v737 = vunpack.c.h.b16 %v129
      %v738 = vunpack.c.l.b16 %v130
      %v739 = vunpack.c.h.b16 %v130
      %v740 = vunpack.c.l.b16 %v131
      %v741 = vunpack.c.h.b16 %v131
      %v742 = vunpack.c.l.b16 %v132
      %v743 = vunpack.c.h.b16 %v132
      %v744 = vunpack.c.l.b16 %v133
      %v745 = vunpack.c.h.b16 %v133
      %v746 = vunpack.c.l.b16 %v134
      %v747 = vunpack.c.h.b16 %v134
      %v748 = vunpack.c.l.b16 %v135
      %v749 = vunpack.c.h.b16 %v135
      %v750 = vunpack.c.l.b16 %v136
      %v751 = vunpack.c.h.b16 %v136
      %v752 = vunpack.c.l.b16 %v137
      %v753 = vunpack.c.h.b16 %v137
      %v754 = vunpack.c.l.b16 %v138
      %v755 = vunpack.c.h.b16 %v138
      %v756 = vunpack.c.l.b16 %v139
      %v757 = vunpack.c.h.b16 %v139
      %v758 = vunpack.c.l.b16 %v140
      %v759 = vunpack.c.h.b16 %v140
      %v760 = vunpack.c.l.b16 %v141
      %v761 = vunpack.c.h.b16 %v141
      %v762 = vunpack.c.l.b16 %v142
      %v763 = vunpack.c.h.b16 %v142
      %v764 = vunpack.c.l.b16 %v143
      %v765 = vunpack.c.h.b16 %v143
      %v766 = vunpack.c.l.b16 %v144
      %v767 = vunpack.c.h.b16 %v144
      %v768 = vunpack.c.l.b16 %v145
      %v769 = vunpack.c.h.b16 %v145
      %v770 = vunpack.c.l.b16 %v146
      %v771 = vunpack.c.h.b16 %v146
      %v772 = vunpack.c.l.b16 %v147
      %v773 = vunpack.c.h.b16 %v147
      %v774 = vunpack.c.l.b16 %v148
      %v775 = vunpack.c.h.b16 %v148
      %v776 = vunpack.c.l.b16 %v149
      %v777 = vunpack.c.h.b16 %v149
      %v778 = vunpack.c.l.b16 %v150
      %v779 = vunpack.c.h.b16 %v150
      %v780 = vunpack.c.l.b16 %v151
      %v781 = vunpack.c.h.b16 %v151
      %v782 = vunpack.c.l.b16 %v152
      %v783 = vunpack.c.h.b16 %v152
      %v784 = vunpack.c.l.b16 %v153
      %v785 = vunpack.c.h.b16 %v153
      %v786 = vunpack.c.l.b16 %v154
      %v787 = vunpack.c.h.b16 %v154
      %v788 = vunpack.c.l.b16 %v155
      %v789 = vunpack.c.h.b16 %v155
      %v790 = vunpack.c.l.b16 %v156
      %v791 = vunpack.c.h.b16 %v156
      %v792 = vunpack.c.l.b16 %v157
      %v793 = vunpack.c.h.b16 %v157
      %v794 = vunpack.c.l.b16 %v158
      %v795 = vunpack.c.h.b16 %v158
      %v796 = vunpack.c.l.b16 %v159
      %v797 = vunpack.c.h.b16 %v159
      %v798 = vunpack.c.l.b16 %v160
      %v799 = vunpack.c.h.b16 %v160
      %v800 = vunpack.c.l.b16 %v161
      %v801 = vunpack.c.h.b16 %v161
      %v802 = vunpack.c.l.b16 %v162
      %v803 = vunpack.c.h.b16 %v162
      %v804 = vunpack.c.l.b16 %v163
      %v805 = vunpack.c.h.b16 %v163
      %v806 = vunpack.c.l.b16 %v164
      %v807 = vunpack.c.h.b16 %v164
      %v808 = vunpack.c.l.b16 %v165
      %v809 = vunpack.c.h.b16 %v165
      %v810 = vunpack.c.l.b16 %v166
      %v811 = vunpack.c.h.b16 %v166
      %v812 = vunpack.c.l.b16 %v167
      %v813 = vunpack.c.h.b16 %v167
      %v814 = vunpack.c.l.b16 %v168
      %v815 = vunpack.c.h.b16 %v168
      %v816 = vunpack.c.l.b16 %v169
      %v817 = vunpack.c.h.b16 %v169
      %v818 = vunpack.c.l.b16 %v170
      %v819 = vunpack.c.h.b16 %v170
      %v820 = vunpack.c.l.b16 %v171
      %v821 = vunpack.c.h.b16 %v171
      %v822 = vunpack.c.l.b16 %v172
      %v823 = vunpack.c.h.b16 %v172
      %v824 = vunpack.c.l.b16 %v173
      %v825 = vunpack.c.h.b16 %v173
      %v826 = vunpack.c.l.b16 %v174
      %v827 = vunpack.c.h.b16 %v174
      %v828 = vunpack.c.l.b16 %v175
      %v829 = vunpack.c.h.b16 %v175
      %v830 = vunpack.c.l.b16 %v176
      %v831 = vunpack.c.h.b16 %v176
      %v832 = vunpack.c.l.b16 %v177
      %v833 = vunpack.c.h.b16 %v177
      %v834 = vunpack.c.l.b16 %v178
      %v835 = vunpack.c.h.b16 %v178
      %v836 = vunpack.c.l.b16 %v179
      %v837 = vunpack.c.h.b16 %v179
      %v838 = vunpack.c.l.b16 %v180
      %v839 = vunpack.c.h.b16 %v180
      %v840 = vunpack.c.l.b16 %v181
      %v841 = vunpack.c.h.b16 %v181
      %v842 = vunpack.c.l.b16 %v182
      %v843 = vunpack.c.h.b16 %v182
      %v844 = vunpack.c.l.b16 %v183
      %v845 = vunpack.c.h.b16 %v183
      %v846 = vunpack.c.l.b16 %v184
      %v847 = vunpack.c.h.b16 %v184
      %v848 = vunpack.c.l.b16 %v185
      %v849 = vunpack.c.h.b16 %v185
      %v850 = vunpack.c.l.b16 %v186
      %v851 = vunpack.c.h.b16 %v186
      %v852 = vunpack.c.l.b16 %v187
      %v853 = vunpack.c.h.b16 %v187
      %v854 = vunpack.c.l.b16 %v188
      %v855 = vunpack.c.h.b16 %v188
      %v856 = vunpack.c.l.b16 %v189
      %v857 = vunpack.c.h.b16 %v189
      %v858 = vunpack.c.l.b16 %v190
      %v859 = vunpack.c.h.b16 %v190
      %v860 = vunpack.c.l.b16 %v191
      %v861 = vunpack.c.h.b16 %v191
      %v862 = vunpack.c.l.b16 %v192
      %v863 = vunpack.c.h.b16 %v192
      %v864 = vunpack.c.l.b16 %v193
      %v865 = vunpack.c.h.b16 %v193
      %v866 = vunpack.c.l.b16 %v194
      %v867 = vunpack.c.h.b16 %v194
      %v868 = vunpack.c.l.b16 %v195
      %v869 = vunpack.c.h.b16 %v195
      %v870 = vunpack.c.l.b16 %v196
      %v871 = vunpack.c.h.b16 %v196
      %v872 = vunpack.c.l.b16 %v197
      %v873 = vunpack.c.h.b16 %v197
      %v874 = vunpack.c.l.b16 %v198
      %v875 = vunpack.c.h.b16 %v198
      %v876 = vunpack.c.l.b16 %v199
      %v877 = vunpack.c.h.b16 %v199
      %v878 = vunpack.c.l.b16 %v200
      %v879 = vunpack.c.h.b16 %v200
      %v880 = vunpack.c.l.b16 %v201
      %v881 = vunpack.c.h.b16 %v201
      %v882 = vunpack.c.l.b16 %v202
      %v883 = vunpack.c.h.b16 %v202
      %v884 = vunpack.c.l.b16 %v203
      %v885 = vunpack.c.h.b16 %v203
      %v886 = vunpack.c.l.b16 %v204
      %v887 = vunpack.c.h.b16 %v204
      %v888 = vunpack.c.l.b16 %v205
      %v889 = vunpack.c.h.b16 %v205
      %v890 = vunpack.c.l.b16 %v206
      %v891 = vunpack.c.h.b16 %v206
      %v892 = vunpack.c.l.b16 %v207
      %v893 = vunpack.c.h.b16 %v207
      %v894 = vunpack.c.l.b16 %v208
      %v895 = vunpack.c.h.b16 %v208
      %v896 = vunpack.c.l.b16 %v209
      %v897 = vunpack.c.h.b16 %v209
      %v898 = vunpack.c.l.b16 %v210
      %v899 = vunpack.c.h.b16 %v210
      %v900 = vunpack.c.l.b16 %v211
      %v901 = vunpack.c.h.b16 %v211
      %v902 = vunpack.c.l.b16 %v212
      %v903 = vunpack.c.h.b16 %v212
      %v904 = vunpack.c.l.b16 %v213
      %v905 = vunpack.c.h.b16 %v213
      %v906 = vunpack.c.l.b16 %v214
      %v907 = vunpack.c.h.b16 %v214
      %v908 = vunpack.c.l.b16 %v215
      %v909 = vunpack.c.h.b16 %v215
      %v910 = vunpack.c.l.b16 %v216
      %v911 = vunpack.c.h.b16 %v216
      %v912 = vunpack.c.l.b16 %v217
      %v913 = vunpack.c.h.b16 %v217
      %v914 = vunpack.c.l.b16 %v218
      %v915 = vunpack.c.h.b16 %v218
      %v916 = vunpack.c.l.b16 %v219
      %v917 = vunpack.c.h.b16 %v219
      %v918 = vunpack.c.l.b16 %v220
      %v919 = vunpack.c.h.b16 %v220
      %v920 = vunpack.c.l.b16 %v221
      %v921 = vunpack.c.h.b16 %v221
      %v922 = vunpack.c.l.b16 %v222
      %v923 = vunpack.c.h.b16 %v222
      %v924 = vunpack.c.l.b16 %v223
      %v925 = vunpack.c.h.b16 %v223
      %v926 = vunpack.c.l.b16 %v224
      %v927 = vunpack.c.h.b16 %v224
      %v928 = vunpack.c.l.b16 %v225
      %v929 = vunpack.c.h.b16 %v225
      %v930 = vunpack.c.l.b16 %v226
      %v931 = vunpack.c.h.b16 %v226
      %v932 = vunpack.c.l.b16 %v227
      %v933 = vunpack.c.h.b16 %v227
      %v934 = vunpack.c.l.b16 %v228
      %v935 = vunpack.c.h.b16 %v228
      %v936 = vunpack.c.l.b16 %v229
      %v937 = vunpack.c.h.b16 %v229
      %v938 = vunpack.c.l.b16 %v230
      %v939 = vunpack.c.h.b16 %v230
      %v940 = vunpack.c.l.b16 %v231
      %v941 = vunpack.c.h.b16 %v231
      %v942 = vunpack.c.l.b16 %v232
      %v943 = vunpack.c.h.b16 %v232
      %v944 = vunpack.c.l.b16 %v233
      %v945 = vunpack.c.h.b16 %v233
      %v946 = vunpack.c.l.b16 %v234
      %v947 = vunpack.c.h.b16 %v234
      %v948 = vunpack.c.l.b16 %v235
      %v949 = vunpack.c.h.b16 %v235
      %v950 = vunpack.c.l.b16 %v236
      %v951 = vunpack.c.h.b16 %v236
      %v952 = vunpack.c.l.b16 %v237
      %v953 = vunpack.c.h.b16 %v237
      %v954 = vunpack.c.l.b16 %v238
      %v955 = vunpack.c.h.b16 %v238
      %v956 = vunpack.c.l.b16 %v239
      %v957 = vunpack.c.h.b16 %v239
      %v958 = vunpack.c.l.b16 %v240
      %v959 = vunpack.c.h.b16 %v240
      %v960 = vunpack.c.l.b16 %v241
      %v961 = vunpack.c.h.b16 %v241
      %v962 = vunpack.c.l.b16 %v242
      %v963 = vunpack.c.h.b16 %v242
      %v964 = vunpack.c.l.b16 %v243
      %v965 = vunpack.c.h.b16 %v243
      %v966 = vunpack.c.l.b16 %v244
      %v967 = vunpack.c.h.b16 %v244
      %v968 = vunpack.c.l.b16 %v245
      %v969 = vunpack.c.h.b16 %v245
      %v970 = vunpack.c.l.b16 %v246
      %v971 = vunpack.c.h.b16 %v246
      %v972 = vunpack.c.l.b16 %v247
      %v973 = vunpack.c.h.b16 %v247
      %v974 = vunpack.c.l.b16 %v248
      %v975 = vunpack.c.h.b16 %v248
      %v976 = vunpack.c.l.b16 %v249
      %v977 = vunpack.c.h.b16 %v249
      %v978 = vunpack.c.l.b16 %v250
      %v979 = vunpack.c.h.b16 %v250
      %v980 = vunpack.c.l.b16 %v251
      %v981 = vunpack.c.h.b16 %v251
      %v982 = vunpack.c.l.b16 %v252
      %v983 = vunpack.c.h.b16 %v252
      %v984 = vunpack.c.l.b16 %v253
      %v985 = vunpack.c.h.b16 %v253
      %v986 = vunpack.c.l.b16 %v254
      %v987 = vunpack.c.h.b16 %v254
      %v988 = vunpack.c.l.b16 %v255
      %v989 = vunpack.c.h.b16 %v255
      %v990 = vunpack.c.l.b16 %v256
      %v991 = vunpack.c.h.b16 %v256
      %v992 = vunpack.c.l.b16 %v257
      %v993 = vunpack.c.h.b16 %v257
      %v994 = vunpack.c.l.b16 %v258
      %v995 = vunpack.c.h.b16 %v258
      %v996 = vunpack.c.l.b16 %v259
      %v997 = vunpack.c.h.b16 %v259
      %v998 = vunpack.c.l.b16 %v260
      %v999 = vunpack.c.h.b16 %v260
      %v1000 = vunpack.c.l.b16 %v261
      %v1001 = vunpack.c.h.b16 %v261
      %v1002 = vunpack.c.l.b16 %v262
      %v1003 = vunpack.c.h.b16 %v262
      %v1004 = vunpack.c.l.b16 %v263
      %v1005 = vunpack.c.h.b16 %v263
      %v1006 = vunpack.c.l.b16 %v264
      %v1007 = vunpack.c.h.b16 %v264
      %v1008 = vunpack.c.l.b16 %v265
      %v1009 = vunpack.c.h.b16 %v265
      %v1010 = vunpack.c.l.b16 %v266
      %v1011 = vunpack.c.h.b16 %v266
      %v1012 = vunpack.c.l.b16 %v267
      %v1013 = vunpack.c.h.b16 %v267
      %v1014 = vunpack.c.l.b16 %v268
      %v1015 = vunpack.c.h.b16 %v268
      %v1016 = vunpack.c.l.b16 %v269
      %v1017 = vunpack.c.h.b16 %v269
      %v1018 = vunpack.c.l.b16 %v270
      %v1019 = vunpack.c.h.b16 %v270
      %v1020 = vunpack.c.l.b16 %v271
      %v1021 = vunpack.c.h.b16 %v271
      %v1022 = vunpack.c.l.b16 %v272
      %v1023 = vunpack.c.h.b16 %v272
      %v1024 = vunpack.c.l.b16 %v273
      %v1025 = vunpack.c.h.b16 %v273
      %v1026 = vunpack.c.l.b16 %v274
      %v1027 = vunpack.c.h.b16 %v274
      %v1028 = vunpack.c.l.b16 %v275
      %v1029 = vunpack.c.h.b16 %v275
      %v1030 = vunpack.c.l.b16 %v276
      %v1031 = vunpack.c.h.b16 %v276
      %v1032 = vunpack.c.l.b16 %v277
      %v1033 = vunpack.c.h.b16 %v277
      %v1034 = vunpack.c.l.b16 %v278
      %v1035 = vunpack.c.h.b16 %v278
      %v1036 = vunpack.c.l.b16 %v279
      %v1037 = vunpack.c.h.b16 %v279
      %v1038 = vunpack.c.l.b16 %v280
      %v1039 = vunpack.c.h.b16 %v280
      %v1040 = vunpack.c.l.b16 %v281
      %v1041 = vunpack.c.h.b16 %v281
      %v1042 = vunpack.c.l.b16 %v282
      %v1043 = vunpack.c.h.b16 %v282
      %v1044 = vunpack.c.l.b16 %v283
      %v1045 = vunpack.c.h.b16 %v283
      %v1046 = vunpack.c.l.b16 %v284
      %v1047 = vunpack.c.h.b16 %v284
      %v1048 = vunpack.c.l.b16 %v285
      %v1049 = vunpack.c.h.b16 %v285
      %v1050 = vunpack.c.l.b16 %v286
      %v1051 = vunpack.c.h.b16 %v286
      %v1052 = vunpack.c.l.b16 %v287
      %v1053 = vunpack.c.h.b16 %v287
      %v1054 = vunpack.c.l.b16 %v288
      %v1055 = vunpack.c.h.b16 %v288
      %v1056 = vunpack.c.l.b16 %v289
      %v1057 = vunpack.c.h.b16 %v289
      %v1058 = vunpack.c.l.b16 %v290
      %v1059 = vunpack.c.h.b16 %v290
      %v1060 = vunpack.c.l.b16 %v291
      %v1061 = vunpack.c.h.b16 %v291
      %v1062 = vunpack.c.l.b16 %v292
      %v1063 = vunpack.c.h.b16 %v292
      %v1064 = vunpack.c.l.b16 %v293
      %v1065 = vunpack.c.h.b16 %v293
      %v1066 = vunpack.c.l.b16 %v294
      %v1067 = vunpack.c.h.b16 %v294
      %v1068 = vunpack.c.l.b16 %v295
      %v1069 = vunpack.c.h.b16 %v295
      %v1070 = vunpack.c.l.b16 %v296
      %v1071 = vunpack.c.h.b16 %v296
      %v1072 = vunpack.c.l.b16 %v297
      %v1073 = vunpack.c.h.b16 %v297
      %v1074 = vunpack.c.l.b16 %v298
      %v1075 = vunpack.c.h.b16 %v298
      %v1076 = vunpack.c.l.b16 %v299
      %v1077 = vunpack.c.h.b16 %v299
      %v1078 = vunpack.c.l.b16 %v300
      %v1079 = vunpack.c.h.b16 %v300
      %v1080 = vunpack.c.l.b16 %v301
      %v1081 = vunpack.c.h.b16 %v301
      %v1082 = vunpack.c.l.b16 %v302
      %v1083 = vunpack.c.h.b16 %v302
      %v1084 = vunpack.c.l.b16 %v303
      %v1085 = vunpack.c.h.b16 %v303
      %v1086 = vunpack.c.l.b16 %v304
      %v1087 = vunpack.c.h.b16 %v304
      %v1088 = vunpack.c.l.b16 %v305
      %v1089 = vunpack.c.h.b16 %v305
      %v1090 = vunpack.c.l.b16 %v306
      %v1091 = vunpack.c.h.b16 %v306
      %v1092 = vunpack.c.l.b16 %v307
      %v1093 = vunpack.c.h.b16 %v307
      %v1094 = vunpack.c.l.b16 %v308
      %v1095 = vunpack.c.h.b16 %v308
      %v1096 = vunpack.c.l.b16 %v309
      %v1097 = vunpack.c.h.b16 %v309
      %v1098 = vunpack.c.l.b16 %v310
      %v1099 = vunpack.c.h.b16 %v310
      %v1100 = vunpack.c.l.b16 %v311
      %v1101 = vunpack.c.h.b16 %v311
      %v1102 = vunpack.c.l.b16 %v312
      %v1103 = vunpack.c.h.b16 %v312
      %v1104 = vunpack.c.l.b16 %v313
      %v1105 = vunpack.c.h.b16 %v313
      %v1106 = vunpack.c.l.b16 %v314
      %v1107 = vunpack.c.h.b16 %v314
      %v1108 = vunpack.c.l.b16 %v315
      %v1109 = vunpack.c.h.b16 %v315
      %v1110 = vunpack.c.l.b16 %v316
      %v1111 = vunpack.c.h.b16 %v316
      %v1112 = vunpack.c.l.b16 %v317
      %v1113 = vunpack.c.h.b16 %v317
      %v1114 = vpack.c.b16 %v606, %v602
      %v1115 = vpack.c.b16 %v607, %v603
      %v1116 = vpack.c.b16 %v608, %v604
      %v1117 = vpack.c.b16 %v609, %v605
      %v1118 = vpack.c.b16 %v614, %v610
      %v1119 = vpack.c.b16 %v615, %v611
      %v1120 = vpack.c.b16 %v616, %v612
      %v1121 = vpack.c.b16 %v617, %v613
      %v1122 = vpack.c.b16 %v622, %v618
      %v1123 = vpack.c.b16 %v623, %v619
      %v1124 = vpack.c.b16 %v624, %v620
      %v1125 = vpack.c.b16 %v625, %v621
      %v1126 = vpack.c.b16 %v630, %v626
      %v1127 = vpack.c.b16 %v631, %v627
      %v1128 = vpack.c.b16 %v632, %v628
      %v1129 = vpack.c.b16 %v633, %v629
      %v1130 = vpack.c.b16 %v638, %v634
      %v1131 = vpack.c.b16 %v639, %v635
      %v1132 = vpack.c.b16 %v640, %v636
      %v1133 = vpack.c.b16 %v641, %v637
      %v1134 = vpack.c.b16 %v646, %v642
      %v1135 = vpack.c.b16 %v647, %v643
      %v1136 = vpack.c.b16 %v648, %v644
      %v1137 = vpack.c.b16 %v649, %v645
      %v1138 = vpack.c.b16 %v654, %v650
      %v1139 = vpack.c.b16 %v655, %v651
      %v1140 = vpack.c.b16 %v656, %v652
      %v1141 = vpack.c.b16 %v657, %v653
      %v1142 = vpack.c.b16 %v662, %v658
      %v1143 = vpack.c.b16 %v663, %v659
      %v1144 = vpack.c.b16 %v664, %v660
      %v1145 = vpack.c.b16 %v665, %v661
      %v1146 = vpack.c.b16 %v670, %v666
      %v1147 = vpack.c.b16 %v671, %v667
      %v1148 = vpack.c.b16 %v672, %v668
      %v1149 = vpack.c.b16 %v673, %v669
      %v1150 = vpack.c.b16 %v678, %v674
      %v1151 = vpack.c.b16 %v679, %v675
      %v1152 = vpack.c.b16 %v680, %v676
      %v1153 = vpack.c.b16 %v681, %v677
      %v1154 = vpack.c.b16 %v686, %v682
      %v1155 = vpack.c.b16 %v687, %v683
      %v1156 = vpack.c.b16 %v688, %v684
      %v1157 = vpack.c.b16 %v689, %v685
      %v1158 = vpack.c.b16 %v694, %v690
      %v1159 = vpack.c.b16 %v695, %v691
      %v1160 = vpack.c.b16 %v696, %v692
      %v1161 = vpack.c.b16 %v697, %v693
      %v1162 = vpack.c.b16 %v702, %v698
      %v1163 = vpack.c.b16 %v703, %v699
      %v1164 = vpack.c.b16 %v704, %v700
      %v1165 = vpack.c.b16 %v705, %v701
      %v1166 = vpack.c.b16 %v710, %v706
      %v1167 = vpack.c.b16 %v711, %v707
      %v1168 = vpack.c.b16 %v712, %v708
      %v1169 = vpack.c.b16 %v713, %v709
      %v1170 = vpack.c.b16 %v718, %v714
      %v1171 = vpack.c.b16 %v719, %v715
      %v1172 = vpack.c.b16 %v720, %v716
      %v1173 = vpack.c.b16 %v721, %v717
      %v1174 = vpack.c.b16 %v726, %v722
      %v1175 = vpack.c.b16 %v727, %v723
      %v1176 = vpack.c.b16 %v728, %v724
      %v1177 = vpack.c.b16 %v729, %v725
      %v1178 = vpack.c.b16 %v734, %v730
      %v1179 = vpack.c.b16 %v735, %v731
      %v1180 = vpack.c.b16 %v736, %v732
      %v1181 = vpack.c.b16 %v737, %v733
      %v1182 = vpack.c.b16 %v742, %v738
      %v1183 = vpack.c.b16 %v743, %v739
      %v1184 = vpack.c.b16 %v744, %v740
      %v1185 = vpack.c.b16 %v745, %v741
      %v1186 = vpack.c.b16 %v750, %v746
      %v1187 = vpack.c.b16 %v751, %v747
      %v1188 = vpack.c.b16 %v752, %v748
      %v1189 = vpack.c.b16 %v753, %v749
      %v1190 = vpack.c.b16 %v758, %v754
      %v1191 = vpack.c.b16 %v759, %v755
      %v1192 = vpack.c.b16 %v760, %v756
      %v1193 = vpack.c.b16 %v761, %v757
      %v1194 = vpack.c.b16 %v766, %v762
      %v1195 = vpack.c.b16 %v767, %v763
      %v1196 = vpack.c.b16 %v768, %v764
      %v1197 = vpack.c.b16 %v769, %v765
      %v1198 = vpack.c.b16 %v774, %v770
      %v1199 = vpack.c.b16 %v775, %v771
      %v1200 = vpack.c.b16 %v776, %v772
      %v1201 = vpack.c.b16 %v777, %v773
      %v1202 = vpack.c.b16 %v782, %v778
      %v1203 = vpack.c.b16 %v783, %v779
      %v1204 = vpack.c.b16 %v784, %v780
      %v1205 = vpack.c.b16 %v785, %v781
      %v1206 = vpack.c.b16 %v790, %v786
      %v1207 = vpack.c.b16 %v791, %v787
      %v1208 = vpack.c.b16 %v792, %v788
      %v1209 = vpack.c.b16 %v793, %v789
      %v1210 = vpack.c.b16 %v798, %v794
      %v1211 = vpack.c.b16 %v799, %v795
      %v1212 = vpack.c.b16 %v800, %v796
      %v1213 = vpack.c.b16 %v801, %v797
      %v1214 = vpack.c.b16 %v806, %v802
      %v1215 = vpack.c.b16 %v807, %v803
      %v1216 = vpack.c.b16 %v808, %v804
      %v1217 = vpack.c.b16 %v809, %v805
      %v1218 = vpack.c.b16 %v814, %v810
      %v1219 = vpack.c.b16 %v815, %v811
      %v1220 = vpack.c.b16 %v816, %v812
      %v1221 = vpack.c.b16 %v817, %v813
      %v1222 = vpack.c.b16 %v822, %v818
      %v1223 = vpack.c.b16 %v823, %v819
      %v1224 = vpack.c.b16 %v824, %v820
      %v1225 = vpack.c.b16 %v825, %v821
      %v1226 = vpack.c.b16 %v830, %v826
      %v1227 = vpack.c.b16 %v831, %v827
      %v1228 = vpack.c.b16 %v832, %v828
      %v1229 = vpack.c.b16 %v833, %v829
      %v1230 = vpack.c.b16 %v838, %v834
      %v1231 = vpack.c.b16 %v839, %v835
      %v1232 = vpack.c.b16 %v840, %v836
      %v1233 = vpack.c.b16 %v841, %v837
      %v1234 = vpack.c.b16 %v846, %v842
      %v1235 = vpack.c.b16 %v847, %v843
      %v1236 = vpack.c.b16 %v848, %v844
      %v1237 = vpack.c.b16 %v849, %v845
      %v1238 = vpack.c.b16 %v854, %v850
      %v1239 = vpack.c.b16 %v855, %v851
      %v1240 = vpack.c.b16 %v856, %v852
      %v1241 = vpack.c.b16 %v857, %v853
      %v1242 = vpack.c.b16 %v862, %v858
      %v1243 = vpack.c.b16 %v863, %v859
      %v1244 = vpack.c.b16 %v864, %v860
      %v1245 = vpack.c.b16 %v865, %v861
      %v1246 = vpack.c.b16 %v870, %v866
      %v1247 = vpack.c.b16 %v871, %v867
      %v1248 = vpack.c.b16 %v872, %v868
      %v1249 = vpack.c.b16 %v873, %v869
      %v1250 = vpack.c.b16 %v878, %v874
      %v1251 = vpack.c.b16 %v879, %v875
      %v1252 = vpack.c.b16 %v880, %v876
      %v1253 = vpack.c.b16 %v881, %v877
      %v1254 = vpack.c.b16 %v886, %v882
      %v1255 = vpack.c.b16 %v887, %v883
      %v1256 = vpack.c.b16 %v888, %v884
      %v1257 = vpack.c.b16 %v889, %v885
      %v1258 = vpack.c.b16 %v894, %v890
      %v1259 = vpack.c.b16 %v895, %v891
      %v1260 = vpack.c.b16 %v896, %v892
      %v1261 = vpack.c.b16 %v897, %v893
      %v1262 = vpack.c.b16 %v902, %v898
      %v1263 = vpack.c.b16 %v903, %v899
      %v1264 = vpack.c.b16 %v904, %v900
      %v1265 = vpack.c.b16 %v905, %v901
      %v1266 = vpack.c.b16 %v910, %v906
      %v1267 = vpack.c.b16 %v911, %v907
      %v1268 = vpack.c.b16 %v912, %v908
      %v1269 = vpack.c.b16 %v913, %v909
      %v1270 = vpack.c.b16 %v918, %v914
      %v1271 = vpack.c.b16 %v919, %v915
      %v1272 = vpack.c.b16 %v920, %v916
      %v1273 = vpack.c.b16 %v921, %v917
      %v1274 = vpack.c.b16 %v926, %v922
      %v1275 = vpack.c.b16 %v927, %v923
      %v1276 = vpack.c.b16 %v928, %v924
      %v1277 = vpack.c.b16 %v929, %v925
      %v1278 = vpack.c.b16 %v934, %v930
      %v1279 = vpack.c.b16 %v935, %v931
      %v1280 = vpack.c.b16 %v936, %v932
      %v1281 = vpack.c.b16 %v937, %v933
      %v1282 = vpack.c.b16 %v942, %v938
      %v1283 = vpack.c.b16 %v943, %v939
      %v1284 = vpack.c.b16 %v944, %v940
      %v1285 = vpack.c.b16 %v945, %v941
      %v1286 = vpack.c.b16 %v950, %v946
      %v1287 = vpack.c.b16 %v951, %v947
      %v1288 = vpack.c.b16 %v952, %v948
      %v1289 = vpack.c.b16 %v953, %v949
      %v1290 = vpack.c.b16 %v958, %v954
      %v1291 = vpack.c.b16 %v959, %v955
      %v1292 = vpack.c.b16 %v960, %v956
      %v1293 = vpack.c.b16 %v961, %v957
      %v1294 = vpack.c.b16 %v966, %v962
      %v1295 = vpack.c.b16 %v967, %v963
      %v1296 = vpack.c.b16 %v968, %v964
      %v1297 = vpack.c.b16 %v969, %v965
      %v1298 = vpack.c.b16 %v974, %v970
      %v1299 = vpack.c.b16 %v975, %v971
      %v1300 = vpack.c.b16 %v976, %v972
      %v1301 = vpack.c.b16 %v977, %v973
      %v1302 = vpack.c.b16 %v982, %v978
      %v1303 = vpack.c.b16 %v983, %v979
      %v1304 = vpack.c.b16 %v984, %v980
      %v1305 = vpack.c.b16 %v985, %v981
      %v1306 = vpack.c.b16 %v990, %v986
      %v1307 = vpack.c.b16 %v991, %v987
      %v1308 = vpack.c.b16 %v992, %v988
      %v1309 = vpack.c.b16 %v993, %v989
      %v1310 = vpack.c.b16 %v998, %v994
      %v1311 = vpack.c.b16 %v999, %v995
      %v1312 = vpack.c.b16 %v1000, %v996
      %v1313 = vpack.c.b16 %v1001, %v997
      %v1314 = vpack.c.b16 %v1006, %v1002
      %v1315 = vpack.c.b16 %v1007, %v1003
      %v1316 = vpack.c.b16 %v1008, %v1004
      %v1317 = vpack.c.b16 %v1009, %v1005
      %v1318 = vpack.c.b16 %v1014, %v1010
      %v1319 = vpack.c.b16 %v1015, %v1011
      %v1320 = vpack.c.b16 %v1016, %v1012
      %v1321 = vpack.c.b16 %v1017, %v1013
      %v1322 = vpack.c.b16 %v1022, %v1018
      %v1323 = vpack.c.b16 %v1023, %v1019
      %v1324 = vpack.c.b16 %v1024, %v1020
      %v1325 = vpack.c.b16 %v1025, %v1021
      %v1326 = vpack.c.b16 %v1030, %v1026
      %v1327 = vpack.c.b16 %v1031, %v1027
      %v1328 = vpack.c.b16 %v1032, %v1028
      %v1329 = vpack.c.b16 %v1033, %v1029
      %v1330 = vpack.c.b16 %v1038, %v1034
      %v1331 = vpack.c.b16 %v1039, %v1035
      %v1332 = vpack.c.b16 %v1040, %v1036
      %v1333 = vpack.c.b16 %v1041, %v1037
      %v1334 = vpack.c.b16 %v1046, %v1042
      %v1335 = vpack.c.b16 %v1047, %v1043
      %v1336 = vpack.c.b16 %v1048, %v1044
      %v1337 = vpack.c.b16 %v1049, %v1045
      %v1338 = vpack.c.b16 %v1054, %v1050
      %v1339 = vpack.c.b16 %v1055, %v1051
      %v1340 = vpack.c.b16 %v1056, %v1052
      %v1341 = vpack.c.b16 %v1057, %v1053
      %v1342 = vpack.c.b16 %v1062, %v1058
      %v1343 = vpack.c.b16 %v1063, %v1059
      %v1344 = vpack.c.b16 %v1064, %v1060
      %v1345 = vpack.c.b16 %v1065, %v1061
      %v1346 = vpack.c.b16 %v1070, %v1066
      %v1347 = vpack.c.b16 %v1071, %v1067
      %v1348 = vpack.c.b16 %v1072, %v1068
      %v1349 = vpack.c.b16 %v1073, %v1069
      %v1350 = vpack.c.b16 %v1078, %v1074
      %v1351 = vpack.c.b16 %v1079, %v1075
      %v1352 = vpack.c.b16 %v1080, %v1076
      %v1353 = vpack.c.b16 %v1081, %v1077
      %v1354 = vpack.c.b16 %v1086, %v1082
      %v1355 = vpack.c.b16 %v1087, %v1083
      %v1356 = vpack.c.b16 %v1088, %v1084
      %v1357 = vpack.c.b16 %v1089, %v1085
      %v1358 = vpack.c.b16 %v1094, %v1090
      %v1359 = vpack.c.b16 %v1095, %v1091
      %v1360 = vpack.c.b16 %v1096, %v1092
      %v1361 = vpack.c.b16 %v1097, %v1093
      %v1362 = vpack.c.b16 %v1102, %v1098
      %v1363 = vpack.c.b16 %v1103, %v1099
      %v1364 = vpack.c.b16 %v1104, %v1100
      %v1365 = vpack.c.b16 %v1105, %v1101
      %v1366 = vpack.c.b16 %v1110, %v1106
      %v1367 = vpack.c.b16 %v1111, %v1107
      %v1368 = vpack.c.b16 %v1112, %v1108
      %v1369 = vpack.c.b16 %v1113, %v1109
      %1626 = vmatpush.bf16.msra.mxu0 %v1142
      %1627 = vmatpush.bf16.msra.mxu0 %v1138
      %1628 = vmatpush.bf16.msra.mxu0 %v1134
      %1629 = vmatpush.bf16.msra.mxu0 %v1130
      %1630 = vmatpush.bf16.msra.mxu0 %v1126
      %1631 = vmatpush.bf16.msra.mxu0 %v1122
      %1632 = vmatpush.bf16.msra.mxu0 %v1118
      %1633 = vmatpush.bf16.msra.mxu0 %v1114
      %1634 = vmatmul.bf16.gmra.mxu0 %v330
      %v1635 = vpop.f32.mrf.mxu0
      %v1636 = vadd.f32 0.0, %v1635
      %v1637 = vpop.f32.mrf.mxu0
      %1638 = vdwg.mxu0
      %1639 = vmatpush.bf16.msra.mxu0 %v1174
      %1640 = vmatpush.bf16.msra.mxu0 %v1170
      %1641 = vmatpush.bf16.msra.mxu0 %v1166
      %1642 = vmatpush.bf16.msra.mxu0 %v1162
      %1643 = vmatpush.bf16.msra.mxu0 %v1158
      %1644 = vmatpush.bf16.msra.mxu0 %v1154
      %1645 = vmatpush.bf16.msra.mxu0 %v1150
      %1646 = vmatpush.bf16.msra.mxu0 %v1146
      %1647 = vmatmul.bf16.gmra.mxu0 %v331
      %v1648 = vpop.f32.mrf.mxu0
      %v1649 = vadd.f32 %v1636, %v1648
      %v1650 = vpop.f32.mrf.mxu0
      %1651 = vdwg.mxu0
      %1652 = vmatpush.bf16.msra.mxu0 %v1206
      %1653 = vmatpush.bf16.msra.mxu0 %v1202
      %1654 = vmatpush.bf16.msra.mxu0 %v1198
      %1655 = vmatpush.bf16.msra.mxu0 %v1194
      %1656 = vmatpush.bf16.msra.mxu0 %v1190
      %1657 = vmatpush.bf16.msra.mxu0 %v1186
      %1658 = vmatpush.bf16.msra.mxu0 %v1182
      %1659 = vmatpush.bf16.msra.mxu0 %v1178
      %1660 = vmatmul.bf16.gmra.mxu0 %v332
      %v1661 = vpop.f32.mrf.mxu0
      %v1662 = vadd.f32 %v1649, %v1661
      %v1663 = vpop.f32.mrf.mxu0
      %1664 = vdwg.mxu0
      %1665 = vmatpush.bf16.msra.mxu0 %v1238
      %1666 = vmatpush.bf16.msra.mxu0 %v1234
      %1667 = vmatpush.bf16.msra.mxu0 %v1230
      %1668 = vmatpush.bf16.msra.mxu0 %v1226
      %1669 = vmatpush.bf16.msra.mxu0 %v1222
      %1670 = vmatpush.bf16.msra.mxu0 %v1218
      %1671 = vmatpush.bf16.msra.mxu0 %v1214
      %1672 = vmatpush.bf16.msra.mxu0 %v1210
      %1673 = vmatmul.bf16.gmra.mxu0 %v333
      %v1674 = vpop.f32.mrf.mxu0
      %v1675 = vadd.f32 %v1662, %v1674
      %v1676 = vpop.f32.mrf.mxu0
      %1677 = vdwg.mxu0
      %1678 = vmatpush.bf16.msra.mxu0 %v1270
      %1679 = vmatpush.bf16.msra.mxu0 %v1266
      %1680 = vmatpush.bf16.msra.mxu0 %v1262
      %1681 = vmatpush.bf16.msra.mxu0 %v1258
      %1682 = vmatpush.bf16.msra.mxu0 %v1254
      %1683 = vmatpush.bf16.msra.mxu0 %v1250
      %1684 = vmatpush.bf16.msra.mxu0 %v1246
      %1685 = vmatpush.bf16.msra.mxu0 %v1242
      %1686 = vmatmul.bf16.gmra.mxu0 %v334
      %v1687 = vpop.f32.mrf.mxu0
      %v1688 = vadd.f32 %v1675, %v1687
      %v1689 = vpop.f32.mrf.mxu0
      %1690 = vdwg.mxu0
      %1691 = vmatpush.bf16.msra.mxu0 %v1302
      %1692 = vmatpush.bf16.msra.mxu0 %v1298
      %1693 = vmatpush.bf16.msra.mxu0 %v1294
      %1694 = vmatpush.bf16.msra.mxu0 %v1290
      %1695 = vmatpush.bf16.msra.mxu0 %v1286
      %1696 = vmatpush.bf16.msra.mxu0 %v1282
      %1697 = vmatpush.bf16.msra.mxu0 %v1278
      %1698 = vmatpush.bf16.msra.mxu0 %v1274
      %1699 = vmatmul.bf16.gmra.mxu0 %v335
      %v1700 = vpop.f32.mrf.mxu0
      %v1701 = vadd.f32 %v1688, %v1700
      %v1702 = vpop.f32.mrf.mxu0
      %1703 = vdwg.mxu0
      %1704 = vmatpush.bf16.msra.mxu0 %v1334
      %1705 = vmatpush.bf16.msra.mxu0 %v1330
      %1706 = vmatpush.bf16.msra.mxu0 %v1326
      %1707 = vmatpush.bf16.msra.mxu0 %v1322
      %1708 = vmatpush.bf16.msra.mxu0 %v1318
      %1709 = vmatpush.bf16.msra.mxu0 %v1314
      %1710 = vmatpush.bf16.msra.mxu0 %v1310
      %1711 = vmatpush.bf16.msra.mxu0 %v1306
      %1712 = vmatmul.bf16.gmra.mxu0 %v336
      %v1713 = vpop.f32.mrf.mxu0
      %v1714 = vadd.f32 %v1701, %v1713
      %v1715 = vpop.f32.mrf.mxu0
      %1716 = vdwg.mxu0
      %1717 = vmatpush.bf16.msra.mxu0 %v1366
      %1718 = vmatpush.bf16.msra.mxu0 %v1362
      %1719 = vmatpush.bf16.msra.mxu0 %v1358
      %1720 = vmatpush.bf16.msra.mxu0 %v1354
      %1721 = vmatpush.bf16.msra.mxu0 %v1350
      %1722 = vmatpush.bf16.msra.mxu0 %v1346
      %1723 = vmatpush.bf16.msra.mxu0 %v1342
      %1724 = vmatpush.bf16.msra.mxu0 %v1338
      %1725 = vmatmul.bf16.gmra.mxu0 %v337
      %v1726 = vpop.f32.mrf.mxu0
      %v1727 = vadd.f32 %v1714, %v1726
      %v1728 = vpop.f32.mrf.mxu0
      %1729 = vdwg.mxu0
      %1730 = vmatpush.bf16.msra.mxu0 %v1143
      %1731 = vmatpush.bf16.msra.mxu0 %v1139
      %1732 = vmatpush.bf16.msra.mxu0 %v1135
      %1733 = vmatpush.bf16.msra.mxu0 %v1131
      %1734 = vmatpush.bf16.msra.mxu0 %v1127
      %1735 = vmatpush.bf16.msra.mxu0 %v1123
      %1736 = vmatpush.bf16.msra.mxu0 %v1119
      %1737 = vmatpush.bf16.msra.mxu0 %v1115
      %1738 = vmatmul.bf16.gmra.mxu0 %v330
      %v1739 = vpop.f32.mrf.mxu0
      %v1740 = vadd.f32 0.0, %v1739
      %v1741 = vpop.f32.mrf.mxu0
      %1742 = vdwg.mxu0
      %1743 = vmatpush.bf16.msra.mxu0 %v1175
      %1744 = vmatpush.bf16.msra.mxu0 %v1171
      %1745 = vmatpush.bf16.msra.mxu0 %v1167
      %1746 = vmatpush.bf16.msra.mxu0 %v1163
      %1747 = vmatpush.bf16.msra.mxu0 %v1159
      %1748 = vmatpush.bf16.msra.mxu0 %v1155
      %1749 = vmatpush.bf16.msra.mxu0 %v1151
      %1750 = vmatpush.bf16.msra.mxu0 %v1147
      %1751 = vmatmul.bf16.gmra.mxu0 %v331
      %v1752 = vpop.f32.mrf.mxu0
      %v1753 = vadd.f32 %v1740, %v1752
      %v1754 = vpop.f32.mrf.mxu0
      %1755 = vdwg.mxu0
      %1756 = vmatpush.bf16.msra.mxu0 %v1207
      %1757 = vmatpush.bf16.msra.mxu0 %v1203
      %1758 = vmatpush.bf16.msra.mxu0 %v1199
      %1759 = vmatpush.bf16.msra.mxu0 %v1195
      %1760 = vmatpush.bf16.msra.mxu0 %v1191
      %1761 = vmatpush.bf16.msra.mxu0 %v1187
      %1762 = vmatpush.bf16.msra.mxu0 %v1183
      %1763 = vmatpush.bf16.msra.mxu0 %v1179
      %1764 = vmatmul.bf16.gmra.mxu0 %v332
      %v1765 = vpop.f32.mrf.mxu0
      %v1766 = vadd.f32 %v1753, %v1765
      %v1767 = vpop.f32.mrf.mxu0
      %1768 = vdwg.mxu0
      %1769 = vmatpush.bf16.msra.mxu0 %v1239
      %1770 = vmatpush.bf16.msra.mxu0 %v1235
      %1771 = vmatpush.bf16.msra.mxu0 %v1231
      %1772 = vmatpush.bf16.msra.mxu0 %v1227
      %1773 = vmatpush.bf16.msra.mxu0 %v1223
      %1774 = vmatpush.bf16.msra.mxu0 %v1219
      %1775 = vmatpush.bf16.msra.mxu0 %v1215
      %1776 = vmatpush.bf16.msra.mxu0 %v1211
      %1777 = vmatmul.bf16.gmra.mxu0 %v333
      %v1778 = vpop.f32.mrf.mxu0
      %v1779 = vadd.f32 %v1766, %v1778
      %v1780 = vpop.f32.mrf.mxu0
      %1781 = vdwg.mxu0
      %1782 = vmatpush.bf16.msra.mxu0 %v1271
      %1783 = vmatpush.bf16.msra.mxu0 %v1267
      %1784 = vmatpush.bf16.msra.mxu0 %v1263
      %1785 = vmatpush.bf16.msra.mxu0 %v1259
      %1786 = vmatpush.bf16.msra.mxu0 %v1255
      %1787 = vmatpush.bf16.msra.mxu0 %v1251
      %1788 = vmatpush.bf16.msra.mxu0 %v1247
      %1789 = vmatpush.bf16.msra.mxu0 %v1243
      %1790 = vmatmul.bf16.gmra.mxu0 %v334
      %v1791 = vpop.f32.mrf.mxu0
      %v1792 = vadd.f32 %v1779, %v1791
      %v1793 = vpop.f32.mrf.mxu0
      %1794 = vdwg.mxu0
      %1795 = vmatpush.bf16.msra.mxu0 %v1303
      %1796 = vmatpush.bf16.msra.mxu0 %v1299
      %1797 = vmatpush.bf16.msra.mxu0 %v1295
      %1798 = vmatpush.bf16.msra.mxu0 %v1291
      %1799 = vmatpush.bf16.msra.mxu0 %v1287
      %1800 = vmatpush.bf16.msra.mxu0 %v1283
      %1801 = vmatpush.bf16.msra.mxu0 %v1279
      %1802 = vmatpush.bf16.msra.mxu0 %v1275
      %1803 = vmatmul.bf16.gmra.mxu0 %v335
      %v1804 = vpop.f32.mrf.mxu0
      %v1805 = vadd.f32 %v1792, %v1804
      %v1806 = vpop.f32.mrf.mxu0
      %1807 = vdwg.mxu0
      %1808 = vmatpush.bf16.msra.mxu0 %v1335
      %1809 = vmatpush.bf16.msra.mxu0 %v1331
      %1810 = vmatpush.bf16.msra.mxu0 %v1327
      %1811 = vmatpush.bf16.msra.mxu0 %v1323
      %1812 = vmatpush.bf16.msra.mxu0 %v1319
      %1813 = vmatpush.bf16.msra.mxu0 %v1315
      %1814 = vmatpush.bf16.msra.mxu0 %v1311
      %1815 = vmatpush.bf16.msra.mxu0 %v1307
      %1816 = vmatmul.bf16.gmra.mxu0 %v336
      %v1817 = vpop.f32.mrf.mxu0
      %v1818 = vadd.f32 %v1805, %v1817
      %v1819 = vpop.f32.mrf.mxu0
      %1820 = vdwg.mxu0
      %1821 = vmatpush.bf16.msra.mxu0 %v1367
      %1822 = vmatpush.bf16.msra.mxu0 %v1363
      %1823 = vmatpush.bf16.msra.mxu0 %v1359
      %1824 = vmatpush.bf16.msra.mxu0 %v1355
      %1825 = vmatpush.bf16.msra.mxu0 %v1351
      %1826 = vmatpush.bf16.msra.mxu0 %v1347
      %1827 = vmatpush.bf16.msra.mxu0 %v1343
      %1828 = vmatpush.bf16.msra.mxu0 %v1339
      %1829 = vmatmul.bf16.gmra.mxu0 %v337
      %v1830 = vpop.f32.mrf.mxu0
      %v1831 = vadd.f32 %v1818, %v1830
      %v1832 = vpop.f32.mrf.mxu0
      %1833 = vdwg.mxu0
      %1834 = vmatpush.bf16.msra.mxu0 %v1144
      %1835 = vmatpush.bf16.msra.mxu0 %v1140
      %1836 = vmatpush.bf16.msra.mxu0 %v1136
      %1837 = vmatpush.bf16.msra.mxu0 %v1132
      %1838 = vmatpush.bf16.msra.mxu0 %v1128
      %1839 = vmatpush.bf16.msra.mxu0 %v1124
      %1840 = vmatpush.bf16.msra.mxu0 %v1120
      %1841 = vmatpush.bf16.msra.mxu0 %v1116
      %1842 = vmatmul.bf16.gmra.mxu0 %v330
      %v1843 = vpop.f32.mrf.mxu0
      %v1844 = vadd.f32 0.0, %v1843
      %v1845 = vpop.f32.mrf.mxu0
      %1846 = vdwg.mxu0
      %1847 = vmatpush.bf16.msra.mxu0 %v1176
      %1848 = vmatpush.bf16.msra.mxu0 %v1172
      %1849 = vmatpush.bf16.msra.mxu0 %v1168
      %1850 = vmatpush.bf16.msra.mxu0 %v1164
      %1851 = vmatpush.bf16.msra.mxu0 %v1160
      %1852 = vmatpush.bf16.msra.mxu0 %v1156
      %1853 = vmatpush.bf16.msra.mxu0 %v1152
      %1854 = vmatpush.bf16.msra.mxu0 %v1148
      %1855 = vmatmul.bf16.gmra.mxu0 %v331
      %v1856 = vpop.f32.mrf.mxu0
      %v1857 = vadd.f32 %v1844, %v1856
      %v1858 = vpop.f32.mrf.mxu0
      %1859 = vdwg.mxu0
      %1860 = vmatpush.bf16.msra.mxu0 %v1208
      %1861 = vmatpush.bf16.msra.mxu0 %v1204
      %1862 = vmatpush.bf16.msra.mxu0 %v1200
      %1863 = vmatpush.bf16.msra.mxu0 %v1196
      %1864 = vmatpush.bf16.msra.mxu0 %v1192
      %1865 = vmatpush.bf16.msra.mxu0 %v1188
      %1866 = vmatpush.bf16.msra.mxu0 %v1184
      %1867 = vmatpush.bf16.msra.mxu0 %v1180
      %1868 = vmatmul.bf16.gmra.mxu0 %v332
      %v1869 = vpop.f32.mrf.mxu0
      %v1870 = vadd.f32 %v1857, %v1869
      %v1871 = vpop.f32.mrf.mxu0
      %1872 = vdwg.mxu0
      %1873 = vmatpush.bf16.msra.mxu0 %v1240
      %1874 = vmatpush.bf16.msra.mxu0 %v1236
      %1875 = vmatpush.bf16.msra.mxu0 %v1232
      %1876 = vmatpush.bf16.msra.mxu0 %v1228
      %1877 = vmatpush.bf16.msra.mxu0 %v1224
      %1878 = vmatpush.bf16.msra.mxu0 %v1220
      %1879 = vmatpush.bf16.msra.mxu0 %v1216
      %1880 = vmatpush.bf16.msra.mxu0 %v1212
      %1881 = vmatmul.bf16.gmra.mxu0 %v333
      %v1882 = vpop.f32.mrf.mxu0
      %v1883 = vadd.f32 %v1870, %v1882
      %v1884 = vpop.f32.mrf.mxu0
      %1885 = vdwg.mxu0
      %1886 = vmatpush.bf16.msra.mxu0 %v1272
      %1887 = vmatpush.bf16.msra.mxu0 %v1268
      %1888 = vmatpush.bf16.msra.mxu0 %v1264
      %1889 = vmatpush.bf16.msra.mxu0 %v1260
      %1890 = vmatpush.bf16.msra.mxu0 %v1256
      %1891 = vmatpush.bf16.msra.mxu0 %v1252
      %1892 = vmatpush.bf16.msra.mxu0 %v1248
      %1893 = vmatpush.bf16.msra.mxu0 %v1244
      %1894 = vmatmul.bf16.gmra.mxu0 %v334
      %v1895 = vpop.f32.mrf.mxu0
      %v1896 = vadd.f32 %v1883, %v1895
      %v1897 = vpop.f32.mrf.mxu0
      %1898 = vdwg.mxu0
      %1899 = vmatpush.bf16.msra.mxu0 %v1304
      %1900 = vmatpush.bf16.msra.mxu0 %v1300
      %1901 = vmatpush.bf16.msra.mxu0 %v1296
      %1902 = vmatpush.bf16.msra.mxu0 %v1292
      %1903 = vmatpush.bf16.msra.mxu0 %v1288
      %1904 = vmatpush.bf16.msra.mxu0 %v1284
      %1905 = vmatpush.bf16.msra.mxu0 %v1280
      %1906 = vmatpush.bf16.msra.mxu0 %v1276
      %1907 = vmatmul.bf16.gmra.mxu0 %v335
      %v1908 = vpop.f32.mrf.mxu0
      %v1909 = vadd.f32 %v1896, %v1908
      %v1910 = vpop.f32.mrf.mxu0
      %1911 = vdwg.mxu0
      %1912 = vmatpush.bf16.msra.mxu0 %v1336
      %1913 = vmatpush.bf16.msra.mxu0 %v1332
      %1914 = vmatpush.bf16.msra.mxu0 %v1328
      %1915 = vmatpush.bf16.msra.mxu0 %v1324
      %1916 = vmatpush.bf16.msra.mxu0 %v1320
      %1917 = vmatpush.bf16.msra.mxu0 %v1316
      %1918 = vmatpush.bf16.msra.mxu0 %v1312
      %1919 = vmatpush.bf16.msra.mxu0 %v1308
      %1920 = vmatmul.bf16.gmra.mxu0 %v336
      %v1921 = vpop.f32.mrf.mxu0
      %v1922 = vadd.f32 %v1909, %v1921
      %v1923 = vpop.f32.mrf.mxu0
      %1924 = vdwg.mxu0
      %1925 = vmatpush.bf16.msra.mxu0 %v1368
      %1926 = vmatpush.bf16.msra.mxu0 %v1364
      %1927 = vmatpush.bf16.msra.mxu0 %v1360
      %1928 = vmatpush.bf16.msra.mxu0 %v1356
      %1929 = vmatpush.bf16.msra.mxu0 %v1352
      %1930 = vmatpush.bf16.msra.mxu0 %v1348
      %1931 = vmatpush.bf16.msra.mxu0 %v1344
      %1932 = vmatpush.bf16.msra.mxu0 %v1340
      %1933 = vmatmul.bf16.gmra.mxu0 %v337
      %v1934 = vpop.f32.mrf.mxu0
      %v1935 = vadd.f32 %v1922, %v1934
      %v1936 = vpop.f32.mrf.mxu0
      %1937 = vdwg.mxu0
      %1938 = vmatpush.bf16.msra.mxu0 %v1145
      %1939 = vmatpush.bf16.msra.mxu0 %v1141
      %1940 = vmatpush.bf16.msra.mxu0 %v1137
      %1941 = vmatpush.bf16.msra.mxu0 %v1133
      %1942 = vmatpush.bf16.msra.mxu0 %v1129
      %1943 = vmatpush.bf16.msra.mxu0 %v1125
      %1944 = vmatpush.bf16.msra.mxu0 %v1121
      %1945 = vmatpush.bf16.msra.mxu0 %v1117
      %1946 = vmatmul.bf16.gmra.mxu0 %v330
      %v1947 = vpop.f32.mrf.mxu0
      %v1948 = vadd.f32 0.0, %v1947
      %v1949 = vpop.f32.mrf.mxu0
      %1950 = vdwg.mxu0
      %1951 = vmatpush.bf16.msra.mxu0 %v1177
      %1952 = vmatpush.bf16.msra.mxu0 %v1173
      %1953 = vmatpush.bf16.msra.mxu0 %v1169
      %1954 = vmatpush.bf16.msra.mxu0 %v1165
      %1955 = vmatpush.bf16.msra.mxu0 %v1161
      %1956 = vmatpush.bf16.msra.mxu0 %v1157
      %1957 = vmatpush.bf16.msra.mxu0 %v1153
      %1958 = vmatpush.bf16.msra.mxu0 %v1149
      %1959 = vmatmul.bf16.gmra.mxu0 %v331
      %v1960 = vpop.f32.mrf.mxu0
      %v1961 = vadd.f32 %v1948, %v1960
      %v1962 = vpop.f32.mrf.mxu0
      %1963 = vdwg.mxu0
      %1964 = vmatpush.bf16.msra.mxu0 %v1209
      %1965 = vmatpush.bf16.msra.mxu0 %v1205
      %1966 = vmatpush.bf16.msra.mxu0 %v1201
      %1967 = vmatpush.bf16.msra.mxu0 %v1197
      %1968 = vmatpush.bf16.msra.mxu0 %v1193
      %1969 = vmatpush.bf16.msra.mxu0 %v1189
      %1970 = vmatpush.bf16.msra.mxu0 %v1185
      %1971 = vmatpush.bf16.msra.mxu0 %v1181
      %1972 = vmatmul.bf16.gmra.mxu0 %v332
      %v1973 = vpop.f32.mrf.mxu0
      %v1974 = vadd.f32 %v1961, %v1973
      %v1975 = vpop.f32.mrf.mxu0
      %1976 = vdwg.mxu0
      %1977 = vmatpush.bf16.msra.mxu0 %v1241
      %1978 = vmatpush.bf16.msra.mxu0 %v1237
      %1979 = vmatpush.bf16.msra.mxu0 %v1233
      %1980 = vmatpush.bf16.msra.mxu0 %v1229
      %1981 = vmatpush.bf16.msra.mxu0 %v1225
      %1982 = vmatpush.bf16.msra.mxu0 %v1221
      %1983 = vmatpush.bf16.msra.mxu0 %v1217
      %1984 = vmatpush.bf16.msra.mxu0 %v1213
      %1985 = vmatmul.bf16.gmra.mxu0 %v333
      %v1986 = vpop.f32.mrf.mxu0
      %v1987 = vadd.f32 %v1974, %v1986
      %v1988 = vpop.f32.mrf.mxu0
      %1989 = vdwg.mxu0
      %1990 = vmatpush.bf16.msra.mxu0 %v1273
      %1991 = vmatpush.bf16.msra.mxu0 %v1269
      %1992 = vmatpush.bf16.msra.mxu0 %v1265
      %1993 = vmatpush.bf16.msra.mxu0 %v1261
      %1994 = vmatpush.bf16.msra.mxu0 %v1257
      %1995 = vmatpush.bf16.msra.mxu0 %v1253
      %1996 = vmatpush.bf16.msra.mxu0 %v1249
      %1997 = vmatpush.bf16.msra.mxu0 %v1245
      %1998 = vmatmul.bf16.gmra.mxu0 %v334
      %v1999 = vpop.f32.mrf.mxu0
      %v2000 = vadd.f32 %v1987, %v1999
      %v2001 = vpop.f32.mrf.mxu0
      %2002 = vdwg.mxu0
      %2003 = vmatpush.bf16.msra.mxu0 %v1305
      %2004 = vmatpush.bf16.msra.mxu0 %v1301
      %2005 = vmatpush.bf16.msra.mxu0 %v1297
      %2006 = vmatpush.bf16.msra.mxu0 %v1293
      %2007 = vmatpush.bf16.msra.mxu0 %v1289
      %2008 = vmatpush.bf16.msra.mxu0 %v1285
      %2009 = vmatpush.bf16.msra.mxu0 %v1281
      %2010 = vmatpush.bf16.msra.mxu0 %v1277
      %2011 = vmatmul.bf16.gmra.mxu0 %v335
      %v2012 = vpop.f32.mrf.mxu0
      %v2013 = vadd.f32 %v2000, %v2012
      %v2014 = vpop.f32.mrf.mxu0
      %2015 = vdwg.mxu0
      %2016 = vmatpush.bf16.msra.mxu0 %v1337
      %2017 = vmatpush.bf16.msra.mxu0 %v1333
      %2018 = vmatpush.bf16.msra.mxu0 %v1329
      %2019 = vmatpush.bf16.msra.mxu0 %v1325
      %2020 = vmatpush.bf16.msra.mxu0 %v1321
      %2021 = vmatpush.bf16.msra.mxu0 %v1317
      %2022 = vmatpush.bf16.msra.mxu0 %v1313
      %2023 = vmatpush.bf16.msra.mxu0 %v1309
      %2024 = vmatmul.bf16.gmra.mxu0 %v336
      %v2025 = vpop.f32.mrf.mxu0
      %v2026 = vadd.f32 %v2013, %v2025
      %v2027 = vpop.f32.mrf.mxu0
      %2028 = vdwg.mxu0
      %2029 = vmatpush.bf16.msra.mxu0 %v1369
      %2030 = vmatpush.bf16.msra.mxu0 %v1365
      %2031 = vmatpush.bf16.msra.mxu0 %v1361
      %2032 = vmatpush.bf16.msra.mxu0 %v1357
      %2033 = vmatpush.bf16.msra.mxu0 %v1353
      %2034 = vmatpush.bf16.msra.mxu0 %v1349
      %2035 = vmatpush.bf16.msra.mxu0 %v1345
      %2036 = vmatpush.bf16.msra.mxu0 %v1341
      %2037 = vmatmul.bf16.gmra.mxu0 %v337
      %v2038 = vpop.f32.mrf.mxu0
      %v2039 = vadd.f32 %v2026, %v2038
      %v2040 = vpop.f32.mrf.mxu0
      %2041 = vdwg.mxu0
      %v2042 = vmul.f32 %v1727, %v1727
      %v2043 = vmul.f32 %v1831, %v1831
      %v2044 = vmul.f32 %v1935, %v1935
      %v2045 = vmul.f32 %v2039, %v2039
      %v2046 = vadd.f32 %v2042, %v2043
      %v2047 = vadd.f32 %v2046, %v2044
      %v2048 = vadd.f32 %v2047, %v2045
      %2049 = vadd.xlane.f32.xlu0 %v2048
      %v2050 = vpop.xlane.xlu0 %2049
      %v2051 = vadd.f32 %v2050, 1e-12
      %v2052 = vrsqrt.pop %v2051
      %v2053 = vmul.f32 %v2052, %v2051
      %v2054 = vmul.f32 %v2053, %v2052
      %v2055 = vmul.f32 0.5, %v2054
      %v2056 = vsub.f32 1.5, %v2055
      %v2057 = vmul.f32 %v2052, %v2056
      %vm2058 = vweird.f32 %v2051
      %vm2059 = vweird.f32 %v2052
      %vm2060 = vmor %vm2058, %vm2059
      %v2061 = vsel %vm2060, %v2052, %v2057
      %v2062 = vmul.f32 %v2061, 64.0
      %vm2063 = vcmask 7168
      %2064 = vst.msk [vmem:[#allocation3] sm:$0xff] %vm2063, %v2062
      %v2065 = vpack.c.bf16 %v1831, %v1727
      %v2066 = vpack.c.bf16 %v2039, %v1935
      %2067 = vst [vmem:[#allocation2] sm:$0xff] %v2065
      %2068 = vst [vmem:[#allocation2 + $0x8] sm:$0xff] %v2066
      %v2069 = vld [vmem:[#allocation6] sm:$0xff]
      %v2070 = vld [vmem:[#allocation6 + $0x8] sm:$0xff]
      %v2071 = vld [vmem:[#allocation6 + $0x10] sm:$0xff]
      %v2072 = vld [vmem:[#allocation6 + $0x18] sm:$0xff]
      %v2073 = vld [vmem:[#allocation6 + $0x20] sm:$0xff]
      %v2074 = vld [vmem:[#allocation6 + $0x28] sm:$0xff]
      %v2075 = vld [vmem:[#allocation6 + $0x30] sm:$0xff]
      %v2076 = vld [vmem:[#allocation6 + $0x38] sm:$0xff]
      %v2077 = vld [vmem:[#allocation6 + $0x40] sm:$0xff]
      %v2078 = vld [vmem:[#allocation6 + $0x48] sm:$0xff]
      %v2079 = vld [vmem:[#allocation6 + $0x50] sm:$0xff]
      %v2080 = vld [vmem:[#allocation6 + $0x58] sm:$0xff]
      %v2081 = vld [vmem:[#allocation6 + $0x60] sm:$0xff]
      %v2082 = vld [vmem:[#allocation6 + $0x68] sm:$0xff]
      %v2083 = vld [vmem:[#allocation6 + $0x70] sm:$0xff]
      %v2084 = vld [vmem:[#allocation6 + $0x78] sm:$0xff]
      %v2085 = vld [vmem:[#allocation6 + $0x80] sm:$0xff]
      %v2086 = vld [vmem:[#allocation6 + $0x88] sm:$0xff]
      %v2087 = vld [vmem:[#allocation6 + $0x90] sm:$0xff]
      %v2088 = vld [vmem:[#allocation6 + $0x98] sm:$0xff]
      %v2089 = vld [vmem:[#allocation6 + $0xa0] sm:$0xff]
      %v2090 = vld [vmem:[#allocation6 + $0xa8] sm:$0xff]
      %v2091 = vld [vmem:[#allocation6 + $0xb0] sm:$0xff]
      %v2092 = vld [vmem:[#allocation6 + $0xb8] sm:$0xff]
      %v2093 = vld [vmem:[#allocation6 + $0xc0] sm:$0xff]
      %v2094 = vld [vmem:[#allocation6 + $0xc8] sm:$0xff]
      %v2095 = vld [vmem:[#allocation6 + $0xd0] sm:$0xff]
      %v2096 = vld [vmem:[#allocation6 + $0xd8] sm:$0xff]
      %v2097 = vld [vmem:[#allocation6 + $0xe0] sm:$0xff]
      %v2098 = vld [vmem:[#allocation6 + $0xe8] sm:$0xff]
      %v2099 = vld [vmem:[#allocation6 + $0xf0] sm:$0xff]
      %v2100 = vld [vmem:[#allocation6 + $0xf8] sm:$0xff]
      %v2101 = vld [vmem:[#allocation6 + $0x100] sm:$0xff]
      %v2102 = vld [vmem:[#allocation6 + $0x108] sm:$0xff]
      %v2103 = vld [vmem:[#allocation6 + $0x110] sm:$0xff]
      %v2104 = vld [vmem:[#allocation6 + $0x118] sm:$0xff]
      %v2105 = vld [vmem:[#allocation6 + $0x120] sm:$0xff]
      %v2106 = vld [vmem:[#allocation6 + $0x128] sm:$0xff]
      %v2107 = vld [vmem:[#allocation6 + $0x130] sm:$0xff]
      %v2108 = vld [vmem:[#allocation6 + $0x138] sm:$0xff]
      %v2109 = vld [vmem:[#allocation6 + $0x140] sm:$0xff]
      %v2110 = vld [vmem:[#allocation6 + $0x148] sm:$0xff]
      %v2111 = vld [vmem:[#allocation6 + $0x150] sm:$0xff]
      %v2112 = vld [vmem:[#allocation6 + $0x158] sm:$0xff]
      %v2113 = vld [vmem:[#allocation6 + $0x160] sm:$0xff]
      %v2114 = vld [vmem:[#allocation6 + $0x168] sm:$0xff]
      %v2115 = vld [vmem:[#allocation6 + $0x170] sm:$0xff]
      %v2116 = vld [vmem:[#allocation6 + $0x178] sm:$0xff]
      %v2117 = vld [vmem:[#allocation6 + $0x180] sm:$0xff]
      %v2118 = vld [vmem:[#allocation6 + $0x188] sm:$0xff]
      %v2119 = vld [vmem:[#allocation6 + $0x190] sm:$0xff]
      %v2120 = vld [vmem:[#allocation6 + $0x198] sm:$0xff]
      %v2121 = vld [vmem:[#allocation6 + $0x1a0] sm:$0xff]
      %v2122 = vld [vmem:[#allocation6 + $0x1a8] sm:$0xff]
      %v2123 = vld [vmem:[#allocation6 + $0x1b0] sm:$0xff]
      %v2124 = vld [vmem:[#allocation6 + $0x1b8] sm:$0xff]
      %v2125 = vld [vmem:[#allocation6 + $0x1c0] sm:$0xff]
      %v2126 = vld [vmem:[#allocation6 + $0x1c8] sm:$0xff]
      %v2127 = vld [vmem:[#allocation6 + $0x1d0] sm:$0xff]
      %v2128 = vld [vmem:[#allocation6 + $0x1d8] sm:$0xff]
      %v2129 = vld [vmem:[#allocation6 + $0x1e0] sm:$0xff]
      %v2130 = vld [vmem:[#allocation6 + $0x1e8] sm:$0xff]
      %v2131 = vld [vmem:[#allocation6 + $0x1f0] sm:$0xff]
      %v2132 = vld [vmem:[#allocation6 + $0x1f8] sm:$0xff]
      %v2133 = vld [vmem:[#allocation6 + $0x200] sm:$0xff]
      %v2134 = vld [vmem:[#allocation6 + $0x208] sm:$0xff]
      %v2135 = vld [vmem:[#allocation6 + $0x210] sm:$0xff]
      %v2136 = vld [vmem:[#allocation6 + $0x218] sm:$0xff]
      %v2137 = vld [vmem:[#allocation6 + $0x220] sm:$0xff]
      %v2138 = vld [vmem:[#allocation6 + $0x228] sm:$0xff]
      %v2139 = vld [vmem:[#allocation6 + $0x230] sm:$0xff]
      %v2140 = vld [vmem:[#allocation6 + $0x238] sm:$0xff]
      %v2141 = vld [vmem:[#allocation6 + $0x240] sm:$0xff]
      %v2142 = vld [vmem:[#allocation6 + $0x248] sm:$0xff]
      %v2143 = vld [vmem:[#allocation6 + $0x250] sm:$0xff]
      %v2144 = vld [vmem:[#allocation6 + $0x258] sm:$0xff]
      %v2145 = vld [vmem:[#allocation6 + $0x260] sm:$0xff]
      %v2146 = vld [vmem:[#allocation6 + $0x268] sm:$0xff]
      %v2147 = vld [vmem:[#allocation6 + $0x270] sm:$0xff]
      %v2148 = vld [vmem:[#allocation6 + $0x278] sm:$0xff]
      %v2149 = vld [vmem:[#allocation6 + $0x280] sm:$0xff]
      %v2150 = vld [vmem:[#allocation6 + $0x288] sm:$0xff]
      %v2151 = vld [vmem:[#allocation6 + $0x290] sm:$0xff]
      %v2152 = vld [vmem:[#allocation6 + $0x298] sm:$0xff]
      %v2153 = vld [vmem:[#allocation6 + $0x2a0] sm:$0xff]
      %v2154 = vld [vmem:[#allocation6 + $0x2a8] sm:$0xff]
      %v2155 = vld [vmem:[#allocation6 + $0x2b0] sm:$0xff]
      %v2156 = vld [vmem:[#allocation6 + $0x2b8] sm:$0xff]
      %v2157 = vld [vmem:[#allocation6 + $0x2c0] sm:$0xff]
      %v2158 = vld [vmem:[#allocation6 + $0x2c8] sm:$0xff]
      %v2159 = vld [vmem:[#allocation6 + $0x2d0] sm:$0xff]
      %v2160 = vld [vmem:[#allocation6 + $0x2d8] sm:$0xff]
      %v2161 = vld [vmem:[#allocation6 + $0x2e0] sm:$0xff]
      %v2162 = vld [vmem:[#allocation6 + $0x2e8] sm:$0xff]
      %v2163 = vld [vmem:[#allocation6 + $0x2f0] sm:$0xff]
      %v2164 = vld [vmem:[#allocation6 + $0x2f8] sm:$0xff]
      %v2165 = vld [vmem:[#allocation6 + $0x300] sm:$0xff]
      %v2166 = vld [vmem:[#allocation6 + $0x308] sm:$0xff]
      %v2167 = vld [vmem:[#allocation6 + $0x310] sm:$0xff]
      %v2168 = vld [vmem:[#allocation6 + $0x318] sm:$0xff]
      %v2169 = vld [vmem:[#allocation6 + $0x320] sm:$0xff]
      %v2170 = vld [vmem:[#allocation6 + $0x328] sm:$0xff]
      %v2171 = vld [vmem:[#allocation6 + $0x330] sm:$0xff]
      %v2172 = vld [vmem:[#allocation6 + $0x338] sm:$0xff]
      %v2173 = vld [vmem:[#allocation6 + $0x340] sm:$0xff]
      %v2174 = vld [vmem:[#allocation6 + $0x348] sm:$0xff]
      %v2175 = vld [vmem:[#allocation6 + $0x350] sm:$0xff]
      %v2176 = vld [vmem:[#allocation6 + $0x358] sm:$0xff]
      %v2177 = vld [vmem:[#allocation6 + $0x360] sm:$0xff]
      %v2178 = vld [vmem:[#allocation6 + $0x368] sm:$0xff]
      %v2179 = vld [vmem:[#allocation6 + $0x370] sm:$0xff]
      %v2180 = vld [vmem:[#allocation6 + $0x378] sm:$0xff]
      %v2181 = vld [vmem:[#allocation6 + $0x380] sm:$0xff]
      %v2182 = vld [vmem:[#allocation6 + $0x388] sm:$0xff]
      %v2183 = vld [vmem:[#allocation6 + $0x390] sm:$0xff]
      %v2184 = vld [vmem:[#allocation6 + $0x398] sm:$0xff]
      %v2185 = vld [vmem:[#allocation6 + $0x3a0] sm:$0xff]
      %v2186 = vld [vmem:[#allocation6 + $0x3a8] sm:$0xff]
      %v2187 = vld [vmem:[#allocation6 + $0x3b0] sm:$0xff]
      %v2188 = vld [vmem:[#allocation6 + $0x3b8] sm:$0xff]
      %v2189 = vld [vmem:[#allocation6 + $0x3c0] sm:$0xff]
      %v2190 = vld [vmem:[#allocation6 + $0x3c8] sm:$0xff]
      %v2191 = vld [vmem:[#allocation6 + $0x3d0] sm:$0xff]
      %v2192 = vld [vmem:[#allocation6 + $0x3d8] sm:$0xff]
      %v2193 = vld [vmem:[#allocation6 + $0x3e0] sm:$0xff]
      %v2194 = vld [vmem:[#allocation6 + $0x3e8] sm:$0xff]
      %v2195 = vld [vmem:[#allocation6 + $0x3f0] sm:$0xff]
      %v2196 = vld [vmem:[#allocation6 + $0x3f8] sm:$0xff]
      %v2199 = vunpack.c.l.b16 %v2065
      %v2200 = vunpack.c.h.b16 %v2065
      %v2201 = vunpack.c.l.b16 %v2066
      %v2202 = vunpack.c.h.b16 %v2066
      %v2203 = vpack.c.b16 %v2199, %v2199
      %v2204 = vpack.c.b16 %v2200, %v2200
      %v2205 = vpack.c.b16 %v2201, %v2201
      %v2206 = vpack.c.b16 %v2202, %v2202
      %v2339 = vunpack.c.l.b16 %v2069
      %v2340 = vunpack.c.h.b16 %v2069
      %v2341 = vunpack.c.l.b16 %v2070
      %v2342 = vunpack.c.h.b16 %v2070
      %v2343 = vunpack.c.l.b16 %v2071
      %v2344 = vunpack.c.h.b16 %v2071
      %v2345 = vunpack.c.l.b16 %v2072
      %v2346 = vunpack.c.h.b16 %v2072
      %v2347 = vunpack.c.l.b16 %v2073
      %v2348 = vunpack.c.h.b16 %v2073
      %v2349 = vunpack.c.l.b16 %v2074
      %v2350 = vunpack.c.h.b16 %v2074
      %v2351 = vunpack.c.l.b16 %v2075
      %v2352 = vunpack.c.h.b16 %v2075
      %v2353 = vunpack.c.l.b16 %v2076
      %v2354 = vunpack.c.h.b16 %v2076
      %v2355 = vunpack.c.l.b16 %v2077
      %v2356 = vunpack.c.h.b16 %v2077
      %v2357 = vunpack.c.l.b16 %v2078
      %v2358 = vunpack.c.h.b16 %v2078
      %v2359 = vunpack.c.l.b16 %v2079
      %v2360 = vunpack.c.h.b16 %v2079
      %v2361 = vunpack.c.l.b16 %v2080
      %v2362 = vunpack.c.h.b16 %v2080
      %v2363 = vunpack.c.l.b16 %v2081
      %v2364 = vunpack.c.h.b16 %v2081
      %v2365 = vunpack.c.l.b16 %v2082
      %v2366 = vunpack.c.h.b16 %v2082
      %v2367 = vunpack.c.l.b16 %v2083
      %v2368 = vunpack.c.h.b16 %v2083
      %v2369 = vunpack.c.l.b16 %v2084
      %v2370 = vunpack.c.h.b16 %v2084
      %v2371 = vunpack.c.l.b16 %v2085
      %v2372 = vunpack.c.h.b16 %v2085
      %v2373 = vunpack.c.l.b16 %v2086
      %v2374 = vunpack.c.h.b16 %v2086
      %v2375 = vunpack.c.l.b16 %v2087
      %v2376 = vunpack.c.h.b16 %v2087
      %v2377 = vunpack.c.l.b16 %v2088
      %v2378 = vunpack.c.h.b16 %v2088
      %v2379 = vunpack.c.l.b16 %v2089
      %v2380 = vunpack.c.h.b16 %v2089
      %v2381 = vunpack.c.l.b16 %v2090
      %v2382 = vunpack.c.h.b16 %v2090
      %v2383 = vunpack.c.l.b16 %v2091
      %v2384 = vunpack.c.h.b16 %v2091
      %v2385 = vunpack.c.l.b16 %v2092
      %v2386 = vunpack.c.h.b16 %v2092
      %v2387 = vunpack.c.l.b16 %v2093
      %v2388 = vunpack.c.h.b16 %v2093
      %v2389 = vunpack.c.l.b16 %v2094
      %v2390 = vunpack.c.h.b16 %v2094
      %v2391 = vunpack.c.l.b16 %v2095
      %v2392 = vunpack.c.h.b16 %v2095
      %v2393 = vunpack.c.l.b16 %v2096
      %v2394 = vunpack.c.h.b16 %v2096
      %v2395 = vunpack.c.l.b16 %v2097
      %v2396 = vunpack.c.h.b16 %v2097
      %v2397 = vunpack.c.l.b16 %v2098
      %v2398 = vunpack.c.h.b16 %v2098
      %v2399 = vunpack.c.l.b16 %v2099
      %v2400 = vunpack.c.h.b16 %v2099
      %v2401 = vunpack.c.l.b16 %v2100
      %v2402 = vunpack.c.h.b16 %v2100
      %v2403 = vunpack.c.l.b16 %v2101
      %v2404 = vunpack.c.h.b16 %v2101
      %v2405 = vunpack.c.l.b16 %v2102
      %v2406 = vunpack.c.h.b16 %v2102
      %v2407 = vunpack.c.l.b16 %v2103
      %v2408 = vunpack.c.h.b16 %v2103
      %v2409 = vunpack.c.l.b16 %v2104
      %v2410 = vunpack.c.h.b16 %v2104
      %v2411 = vunpack.c.l.b16 %v2105
      %v2412 = vunpack.c.h.b16 %v2105
      %v2413 = vunpack.c.l.b16 %v2106
      %v2414 = vunpack.c.h.b16 %v2106
      %v2415 = vunpack.c.l.b16 %v2107
      %v2416 = vunpack.c.h.b16 %v2107
      %v2417 = vunpack.c.l.b16 %v2108
      %v2418 = vunpack.c.h.b16 %v2108
      %v2419 = vunpack.c.l.b16 %v2109
      %v2420 = vunpack.c.h.b16 %v2109
      %v2421 = vunpack.c.l.b16 %v2110
      %v2422 = vunpack.c.h.b16 %v2110
      %v2423 = vunpack.c.l.b16 %v2111
      %v2424 = vunpack.c.h.b16 %v2111
      %v2425 = vunpack.c.l.b16 %v2112
      %v2426 = vunpack.c.h.b16 %v2112
      %v2427 = vunpack.c.l.b16 %v2113
      %v2428 = vunpack.c.h.b16 %v2113
      %v2429 = vunpack.c.l.b16 %v2114
      %v2430 = vunpack.c.h.b16 %v2114
      %v2431 = vunpack.c.l.b16 %v2115
      %v2432 = vunpack.c.h.b16 %v2115
      %v2433 = vunpack.c.l.b16 %v2116
      %v2434 = vunpack.c.h.b16 %v2116
      %v2435 = vunpack.c.l.b16 %v2117
      %v2436 = vunpack.c.h.b16 %v2117
      %v2437 = vunpack.c.l.b16 %v2118
      %v2438 = vunpack.c.h.b16 %v2118
      %v2439 = vunpack.c.l.b16 %v2119
      %v2440 = vunpack.c.h.b16 %v2119
      %v2441 = vunpack.c.l.b16 %v2120
      %v2442 = vunpack.c.h.b16 %v2120
      %v2443 = vunpack.c.l.b16 %v2121
      %v2444 = vunpack.c.h.b16 %v2121
      %v2445 = vunpack.c.l.b16 %v2122
      %v2446 = vunpack.c.h.b16 %v2122
      %v2447 = vunpack.c.l.b16 %v2123
      %v2448 = vunpack.c.h.b16 %v2123
      %v2449 = vunpack.c.l.b16 %v2124
      %v2450 = vunpack.c.h.b16 %v2124
      %v2451 = vunpack.c.l.b16 %v2125
      %v2452 = vunpack.c.h.b16 %v2125
      %v2453 = vunpack.c.l.b16 %v2126
      %v2454 = vunpack.c.h.b16 %v2126
      %v2455 = vunpack.c.l.b16 %v2127
      %v2456 = vunpack.c.h.b16 %v2127
      %v2457 = vunpack.c.l.b16 %v2128
      %v2458 = vunpack.c.h.b16 %v2128
      %v2459 = vunpack.c.l.b16 %v2129
      %v2460 = vunpack.c.h.b16 %v2129
      %v2461 = vunpack.c.l.b16 %v2130
      %v2462 = vunpack.c.h.b16 %v2130
      %v2463 = vunpack.c.l.b16 %v2131
      %v2464 = vunpack.c.h.b16 %v2131
      %v2465 = vunpack.c.l.b16 %v2132
      %v2466 = vunpack.c.h.b16 %v2132
      %v2467 = vunpack.c.l.b16 %v2133
      %v2468 = vunpack.c.h.b16 %v2133
      %v2469 = vunpack.c.l.b16 %v2134
      %v2470 = vunpack.c.h.b16 %v2134
      %v2471 = vunpack.c.l.b16 %v2135
      %v2472 = vunpack.c.h.b16 %v2135
      %v2473 = vunpack.c.l.b16 %v2136
      %v2474 = vunpack.c.h.b16 %v2136
      %v2475 = vunpack.c.l.b16 %v2137
      %v2476 = vunpack.c.h.b16 %v2137
      %v2477 = vunpack.c.l.b16 %v2138
      %v2478 = vunpack.c.h.b16 %v2138
      %v2479 = vunpack.c.l.b16 %v2139
      %v2480 = vunpack.c.h.b16 %v2139
      %v2481 = vunpack.c.l.b16 %v2140
      %v2482 = vunpack.c.h.b16 %v2140
      %v2483 = vunpack.c.l.b16 %v2141
      %v2484 = vunpack.c.h.b16 %v2141
      %v2485 = vunpack.c.l.b16 %v2142
      %v2486 = vunpack.c.h.b16 %v2142
      %v2487 = vunpack.c.l.b16 %v2143
      %v2488 = vunpack.c.h.b16 %v2143
      %v2489 = vunpack.c.l.b16 %v2144
      %v2490 = vunpack.c.h.b16 %v2144
      %v2491 = vunpack.c.l.b16 %v2145
      %v2492 = vunpack.c.h.b16 %v2145
      %v2493 = vunpack.c.l.b16 %v2146
      %v2494 = vunpack.c.h.b16 %v2146
      %v2495 = vunpack.c.l.b16 %v2147
      %v2496 = vunpack.c.h.b16 %v2147
      %v2497 = vunpack.c.l.b16 %v2148
      %v2498 = vunpack.c.h.b16 %v2148
      %v2499 = vunpack.c.l.b16 %v2149
      %v2500 = vunpack.c.h.b16 %v2149
      %v2501 = vunpack.c.l.b16 %v2150
      %v2502 = vunpack.c.h.b16 %v2150
      %v2503 = vunpack.c.l.b16 %v2151
      %v2504 = vunpack.c.h.b16 %v2151
      %v2505 = vunpack.c.l.b16 %v2152
      %v2506 = vunpack.c.h.b16 %v2152
      %v2507 = vunpack.c.l.b16 %v2153
      %v2508 = vunpack.c.h.b16 %v2153
      %v2509 = vunpack.c.l.b16 %v2154
      %v2510 = vunpack.c.h.b16 %v2154
      %v2511 = vunpack.c.l.b16 %v2155
      %v2512 = vunpack.c.h.b16 %v2155
      %v2513 = vunpack.c.l.b16 %v2156
      %v2514 = vunpack.c.h.b16 %v2156
      %v2515 = vunpack.c.l.b16 %v2157
      %v2516 = vunpack.c.h.b16 %v2157
      %v2517 = vunpack.c.l.b16 %v2158
      %v2518 = vunpack.c.h.b16 %v2158
      %v2519 = vunpack.c.l.b16 %v2159
      %v2520 = vunpack.c.h.b16 %v2159
      %v2521 = vunpack.c.l.b16 %v2160
      %v2522 = vunpack.c.h.b16 %v2160
      %v2523 = vunpack.c.l.b16 %v2161
      %v2524 = vunpack.c.h.b16 %v2161
      %v2525 = vunpack.c.l.b16 %v2162
      %v2526 = vunpack.c.h.b16 %v2162
      %v2527 = vunpack.c.l.b16 %v2163
      %v2528 = vunpack.c.h.b16 %v2163
      %v2529 = vunpack.c.l.b16 %v2164
      %v2530 = vunpack.c.h.b16 %v2164
      %v2531 = vunpack.c.l.b16 %v2165
      %v2532 = vunpack.c.h.b16 %v2165
      %v2533 = vunpack.c.l.b16 %v2166
      %v2534 = vunpack.c.h.b16 %v2166
      %v2535 = vunpack.c.l.b16 %v2167
      %v2536 = vunpack.c.h.b16 %v2167
      %v2537 = vunpack.c.l.b16 %v2168
      %v2538 = vunpack.c.h.b16 %v2168
      %v2539 = vunpack.c.l.b16 %v2169
      %v2540 = vunpack.c.h.b16 %v2169
      %v2541 = vunpack.c.l.b16 %v2170
      %v2542 = vunpack.c.h.b16 %v2170
      %v2543 = vunpack.c.l.b16 %v2171
      %v2544 = vunpack.c.h.b16 %v2171
      %v2545 = vunpack.c.l.b16 %v2172
      %v2546 = vunpack.c.h.b16 %v2172
      %v2547 = vunpack.c.l.b16 %v2173
      %v2548 = vunpack.c.h.b16 %v2173
      %v2549 = vunpack.c.l.b16 %v2174
      %v2550 = vunpack.c.h.b16 %v2174
      %v2551 = vunpack.c.l.b16 %v2175
      %v2552 = vunpack.c.h.b16 %v2175
      %v2553 = vunpack.c.l.b16 %v2176
      %v2554 = vunpack.c.h.b16 %v2176
      %v2555 = vunpack.c.l.b16 %v2177
      %v2556 = vunpack.c.h.b16 %v2177
      %v2557 = vunpack.c.l.b16 %v2178
      %v2558 = vunpack.c.h.b16 %v2178
      %v2559 = vunpack.c.l.b16 %v2179
      %v2560 = vunpack.c.h.b16 %v2179
      %v2561 = vunpack.c.l.b16 %v2180
      %v2562 = vunpack.c.h.b16 %v2180
      %v2563 = vunpack.c.l.b16 %v2181
      %v2564 = vunpack.c.h.b16 %v2181
      %v2565 = vunpack.c.l.b16 %v2182
      %v2566 = vunpack.c.h.b16 %v2182
      %v2567 = vunpack.c.l.b16 %v2183
      %v2568 = vunpack.c.h.b16 %v2183
      %v2569 = vunpack.c.l.b16 %v2184
      %v2570 = vunpack.c.h.b16 %v2184
      %v2571 = vunpack.c.l.b16 %v2185
      %v2572 = vunpack.c.h.b16 %v2185
      %v2573 = vunpack.c.l.b16 %v2186
      %v2574 = vunpack.c.h.b16 %v2186
      %v2575 = vunpack.c.l.b16 %v2187
      %v2576 = vunpack.c.h.b16 %v2187
      %v2577 = vunpack.c.l.b16 %v2188
      %v2578 = vunpack.c.h.b16 %v2188
      %v2579 = vunpack.c.l.b16 %v2189
      %v2580 = vunpack.c.h.b16 %v2189
      %v2581 = vunpack.c.l.b16 %v2190
      %v2582 = vunpack.c.h.b16 %v2190
      %v2583 = vunpack.c.l.b16 %v2191
      %v2584 = vunpack.c.h.b16 %v2191
      %v2585 = vunpack.c.l.b16 %v2192
      %v2586 = vunpack.c.h.b16 %v2192
      %v2587 = vunpack.c.l.b16 %v2193
      %v2588 = vunpack.c.h.b16 %v2193
      %v2589 = vunpack.c.l.b16 %v2194
      %v2590 = vunpack.c.h.b16 %v2194
      %v2591 = vunpack.c.l.b16 %v2195
      %v2592 = vunpack.c.h.b16 %v2195
      %v2593 = vunpack.c.l.b16 %v2196
      %v2594 = vunpack.c.h.b16 %v2196
      %v2595 = vpack.c.b16 %v2343, %v2339
      %v2596 = vpack.c.b16 %v2344, %v2340
      %v2597 = vpack.c.b16 %v2345, %v2341
      %v2598 = vpack.c.b16 %v2346, %v2342
      %v2599 = vpack.c.b16 %v2351, %v2347
      %v2600 = vpack.c.b16 %v2352, %v2348
      %v2601 = vpack.c.b16 %v2353, %v2349
      %v2602 = vpack.c.b16 %v2354, %v2350
      %v2603 = vpack.c.b16 %v2359, %v2355
      %v2604 = vpack.c.b16 %v2360, %v2356
      %v2605 = vpack.c.b16 %v2361, %v2357
      %v2606 = vpack.c.b16 %v2362, %v2358
      %v2607 = vpack.c.b16 %v2367, %v2363
      %v2608 = vpack.c.b16 %v2368, %v2364
      %v2609 = vpack.c.b16 %v2369, %v2365
      %v2610 = vpack.c.b16 %v2370, %v2366
      %v2611 = vpack.c.b16 %v2375, %v2371
      %v2612 = vpack.c.b16 %v2376, %v2372
      %v2613 = vpack.c.b16 %v2377, %v2373
      %v2614 = vpack.c.b16 %v2378, %v2374
      %v2615 = vpack.c.b16 %v2383, %v2379
      %v2616 = vpack.c.b16 %v2384, %v2380
      %v2617 = vpack.c.b16 %v2385, %v2381
      %v2618 = vpack.c.b16 %v2386, %v2382
      %v2619 = vpack.c.b16 %v2391, %v2387
      %v2620 = vpack.c.b16 %v2392, %v2388
      %v2621 = vpack.c.b16 %v2393, %v2389
      %v2622 = vpack.c.b16 %v2394, %v2390
      %v2623 = vpack.c.b16 %v2399, %v2395
      %v2624 = vpack.c.b16 %v2400, %v2396
      %v2625 = vpack.c.b16 %v2401, %v2397
      %v2626 = vpack.c.b16 %v2402, %v2398
      %v2627 = vpack.c.b16 %v2407, %v2403
      %v2628 = vpack.c.b16 %v2408, %v2404
      %v2629 = vpack.c.b16 %v2409, %v2405
      %v2630 = vpack.c.b16 %v2410, %v2406
      %v2631 = vpack.c.b16 %v2415, %v2411
      %v2632 = vpack.c.b16 %v2416, %v2412
      %v2633 = vpack.c.b16 %v2417, %v2413
      %v2634 = vpack.c.b16 %v2418, %v2414
      %v2635 = vpack.c.b16 %v2423, %v2419
      %v2636 = vpack.c.b16 %v2424, %v2420
      %v2637 = vpack.c.b16 %v2425, %v2421
      %v2638 = vpack.c.b16 %v2426, %v2422
      %v2639 = vpack.c.b16 %v2431, %v2427
      %v2640 = vpack.c.b16 %v2432, %v2428
      %v2641 = vpack.c.b16 %v2433, %v2429
      %v2642 = vpack.c.b16 %v2434, %v2430
      %v2643 = vpack.c.b16 %v2439, %v2435
      %v2644 = vpack.c.b16 %v2440, %v2436
      %v2645 = vpack.c.b16 %v2441, %v2437
      %v2646 = vpack.c.b16 %v2442, %v2438
      %v2647 = vpack.c.b16 %v2447, %v2443
      %v2648 = vpack.c.b16 %v2448, %v2444
      %v2649 = vpack.c.b16 %v2449, %v2445
      %v2650 = vpack.c.b16 %v2450, %v2446
      %v2651 = vpack.c.b16 %v2455, %v2451
      %v2652 = vpack.c.b16 %v2456, %v2452
      %v2653 = vpack.c.b16 %v2457, %v2453
      %v2654 = vpack.c.b16 %v2458, %v2454
      %v2655 = vpack.c.b16 %v2463, %v2459
      %v2656 = vpack.c.b16 %v2464, %v2460
      %v2657 = vpack.c.b16 %v2465, %v2461
      %v2658 = vpack.c.b16 %v2466, %v2462
      %v2659 = vpack.c.b16 %v2471, %v2467
      %v2660 = vpack.c.b16 %v2472, %v2468
      %v2661 = vpack.c.b16 %v2473, %v2469
      %v2662 = vpack.c.b16 %v2474, %v2470
      %v2663 = vpack.c.b16 %v2479, %v2475
      %v2664 = vpack.c.b16 %v2480, %v2476
      %v2665 = vpack.c.b16 %v2481, %v2477
      %v2666 = vpack.c.b16 %v2482, %v2478
      %v2667 = vpack.c.b16 %v2487, %v2483
      %v2668 = vpack.c.b16 %v2488, %v2484
      %v2669 = vpack.c.b16 %v2489, %v2485
      %v2670 = vpack.c.b16 %v2490, %v2486
      %v2671 = vpack.c.b16 %v2495, %v2491
      %v2672 = vpack.c.b16 %v2496, %v2492
      %v2673 = vpack.c.b16 %v2497, %v2493
      %v2674 = vpack.c.b16 %v2498, %v2494
      %v2675 = vpack.c.b16 %v2503, %v2499
      %v2676 = vpack.c.b16 %v2504, %v2500
      %v2677 = vpack.c.b16 %v2505, %v2501
      %v2678 = vpack.c.b16 %v2506, %v2502
      %v2679 = vpack.c.b16 %v2511, %v2507
      %v2680 = vpack.c.b16 %v2512, %v2508
      %v2681 = vpack.c.b16 %v2513, %v2509
      %v2682 = vpack.c.b16 %v2514, %v2510
      %v2683 = vpack.c.b16 %v2519, %v2515
      %v2684 = vpack.c.b16 %v2520, %v2516
      %v2685 = vpack.c.b16 %v2521, %v2517
      %v2686 = vpack.c.b16 %v2522, %v2518
      %v2687 = vpack.c.b16 %v2527, %v2523
      %v2688 = vpack.c.b16 %v2528, %v2524
      %v2689 = vpack.c.b16 %v2529, %v2525
      %v2690 = vpack.c.b16 %v2530, %v2526
      %v2691 = vpack.c.b16 %v2535, %v2531
      %v2692 = vpack.c.b16 %v2536, %v2532
      %v2693 = vpack.c.b16 %v2537, %v2533
      %v2694 = vpack.c.b16 %v2538, %v2534
      %v2695 = vpack.c.b16 %v2543, %v2539
      %v2696 = vpack.c.b16 %v2544, %v2540
      %v2697 = vpack.c.b16 %v2545, %v2541
      %v2698 = vpack.c.b16 %v2546, %v2542
      %v2699 = vpack.c.b16 %v2551, %v2547
      %v2700 = vpack.c.b16 %v2552, %v2548
      %v2701 = vpack.c.b16 %v2553, %v2549
      %v2702 = vpack.c.b16 %v2554, %v2550
      %v2703 = vpack.c.b16 %v2559, %v2555
      %v2704 = vpack.c.b16 %v2560, %v2556
      %v2705 = vpack.c.b16 %v2561, %v2557
      %v2706 = vpack.c.b16 %v2562, %v2558
      %v2707 = vpack.c.b16 %v2567, %v2563
      %v2708 = vpack.c.b16 %v2568, %v2564
      %v2709 = vpack.c.b16 %v2569, %v2565
      %v2710 = vpack.c.b16 %v2570, %v2566
      %v2711 = vpack.c.b16 %v2575, %v2571
      %v2712 = vpack.c.b16 %v2576, %v2572
      %v2713 = vpack.c.b16 %v2577, %v2573
      %v2714 = vpack.c.b16 %v2578, %v2574
      %v2715 = vpack.c.b16 %v2583, %v2579
      %v2716 = vpack.c.b16 %v2584, %v2580
      %v2717 = vpack.c.b16 %v2585, %v2581
      %v2718 = vpack.c.b16 %v2586, %v2582
      %v2719 = vpack.c.b16 %v2591, %v2587
      %v2720 = vpack.c.b16 %v2592, %v2588
      %v2721 = vpack.c.b16 %v2593, %v2589
      %v2722 = vpack.c.b16 %v2594, %v2590
      %2851 = vmatpush.bf16.msra.mxu0 %v2623
      %2852 = vmatpush.bf16.msra.mxu0 %v2619
      %2853 = vmatpush.bf16.msra.mxu0 %v2615
      %2854 = vmatpush.bf16.msra.mxu0 %v2611
      %2855 = vmatpush.bf16.msra.mxu0 %v2607
      %2856 = vmatpush.bf16.msra.mxu0 %v2603
      %2857 = vmatpush.bf16.msra.mxu0 %v2599
      %2858 = vmatpush.bf16.msra.mxu0 %v2595
      %2859 = vmatmul.bf16.gmra.mxu0 %v2203
      %v2860 = vpop.f32.mrf.mxu0
      %v2861 = vadd.f32 0.0, %v2860
      %v2862 = vpop.f32.mrf.mxu0
      %2863 = vdwg.mxu0
      %2864 = vmatpush.bf16.msra.mxu0 %v2655
      %2865 = vmatpush.bf16.msra.mxu0 %v2651
      %2866 = vmatpush.bf16.msra.mxu0 %v2647
      %2867 = vmatpush.bf16.msra.mxu0 %v2643
      %2868 = vmatpush.bf16.msra.mxu0 %v2639
      %2869 = vmatpush.bf16.msra.mxu0 %v2635
      %2870 = vmatpush.bf16.msra.mxu0 %v2631
      %2871 = vmatpush.bf16.msra.mxu0 %v2627
      %2872 = vmatmul.bf16.gmra.mxu0 %v2204
      %v2873 = vpop.f32.mrf.mxu0
      %v2874 = vadd.f32 %v2861, %v2873
      %v2875 = vpop.f32.mrf.mxu0
      %2876 = vdwg.mxu0
      %2877 = vmatpush.bf16.msra.mxu0 %v2687
      %2878 = vmatpush.bf16.msra.mxu0 %v2683
      %2879 = vmatpush.bf16.msra.mxu0 %v2679
      %2880 = vmatpush.bf16.msra.mxu0 %v2675
      %2881 = vmatpush.bf16.msra.mxu0 %v2671
      %2882 = vmatpush.bf16.msra.mxu0 %v2667
      %2883 = vmatpush.bf16.msra.mxu0 %v2663
      %2884 = vmatpush.bf16.msra.mxu0 %v2659
      %2885 = vmatmul.bf16.gmra.mxu0 %v2205
      %v2886 = vpop.f32.mrf.mxu0
      %v2887 = vadd.f32 %v2874, %v2886
      %v2888 = vpop.f32.mrf.mxu0
      %2889 = vdwg.mxu0
      %2890 = vmatpush.bf16.msra.mxu0 %v2719
      %2891 = vmatpush.bf16.msra.mxu0 %v2715
      %2892 = vmatpush.bf16.msra.mxu0 %v2711
      %2893 = vmatpush.bf16.msra.mxu0 %v2707
      %2894 = vmatpush.bf16.msra.mxu0 %v2703
      %2895 = vmatpush.bf16.msra.mxu0 %v2699
      %2896 = vmatpush.bf16.msra.mxu0 %v2695
      %2897 = vmatpush.bf16.msra.mxu0 %v2691
      %2898 = vmatmul.bf16.gmra.mxu0 %v2206
      %v2899 = vpop.f32.mrf.mxu0
      %v2900 = vadd.f32 %v2887, %v2899
      %v2901 = vpop.f32.mrf.mxu0
      %2902 = vdwg.mxu0
      %2903 = vmatpush.bf16.msra.mxu0 %v2624
      %2904 = vmatpush.bf16.msra.mxu0 %v2620
      %2905 = vmatpush.bf16.msra.mxu0 %v2616
      %2906 = vmatpush.bf16.msra.mxu0 %v2612
      %2907 = vmatpush.bf16.msra.mxu0 %v2608
      %2908 = vmatpush.bf16.msra.mxu0 %v2604
      %2909 = vmatpush.bf16.msra.mxu0 %v2600
      %2910 = vmatpush.bf16.msra.mxu0 %v2596
      %2911 = vmatmul.bf16.gmra.mxu0 %v2203
      %v2912 = vpop.f32.mrf.mxu0
      %v2913 = vadd.f32 0.0, %v2912
      %v2914 = vpop.f32.mrf.mxu0
      %2915 = vdwg.mxu0
      %2916 = vmatpush.bf16.msra.mxu0 %v2656
      %2917 = vmatpush.bf16.msra.mxu0 %v2652
      %2918 = vmatpush.bf16.msra.mxu0 %v2648
      %2919 = vmatpush.bf16.msra.mxu0 %v2644
      %2920 = vmatpush.bf16.msra.mxu0 %v2640
      %2921 = vmatpush.bf16.msra.mxu0 %v2636
      %2922 = vmatpush.bf16.msra.mxu0 %v2632
      %2923 = vmatpush.bf16.msra.mxu0 %v2628
      %2924 = vmatmul.bf16.gmra.mxu0 %v2204
      %v2925 = vpop.f32.mrf.mxu0
      %v2926 = vadd.f32 %v2913, %v2925
      %v2927 = vpop.f32.mrf.mxu0
      %2928 = vdwg.mxu0
      %2929 = vmatpush.bf16.msra.mxu0 %v2688
      %2930 = vmatpush.bf16.msra.mxu0 %v2684
      %2931 = vmatpush.bf16.msra.mxu0 %v2680
      %2932 = vmatpush.bf16.msra.mxu0 %v2676
      %2933 = vmatpush.bf16.msra.mxu0 %v2672
      %2934 = vmatpush.bf16.msra.mxu0 %v2668
      %2935 = vmatpush.bf16.msra.mxu0 %v2664
      %2936 = vmatpush.bf16.msra.mxu0 %v2660
      %2937 = vmatmul.bf16.gmra.mxu0 %v2205
      %v2938 = vpop.f32.mrf.mxu0
      %v2939 = vadd.f32 %v2926, %v2938
      %v2940 = vpop.f32.mrf.mxu0
      %2941 = vdwg.mxu0
      %2942 = vmatpush.bf16.msra.mxu0 %v2720
      %2943 = vmatpush.bf16.msra.mxu0 %v2716
      %2944 = vmatpush.bf16.msra.mxu0 %v2712
      %2945 = vmatpush.bf16.msra.mxu0 %v2708
      %2946 = vmatpush.bf16.msra.mxu0 %v2704
      %2947 = vmatpush.bf16.msra.mxu0 %v2700
      %2948 = vmatpush.bf16.msra.mxu0 %v2696
      %2949 = vmatpush.bf16.msra.mxu0 %v2692
      %2950 = vmatmul.bf16.gmra.mxu0 %v2206
      %v2951 = vpop.f32.mrf.mxu0
      %v2952 = vadd.f32 %v2939, %v2951
      %v2953 = vpop.f32.mrf.mxu0
      %2954 = vdwg.mxu0
      %2955 = vmatpush.bf16.msra.mxu0 %v2625
      %2956 = vmatpush.bf16.msra.mxu0 %v2621
      %2957 = vmatpush.bf16.msra.mxu0 %v2617
      %2958 = vmatpush.bf16.msra.mxu0 %v2613
      %2959 = vmatpush.bf16.msra.mxu0 %v2609
      %2960 = vmatpush.bf16.msra.mxu0 %v2605
      %2961 = vmatpush.bf16.msra.mxu0 %v2601
      %2962 = vmatpush.bf16.msra.mxu0 %v2597
      %2963 = vmatmul.bf16.gmra.mxu0 %v2203
      %v2964 = vpop.f32.mrf.mxu0
      %v2965 = vadd.f32 0.0, %v2964
      %v2966 = vpop.f32.mrf.mxu0
      %2967 = vdwg.mxu0
      %2968 = vmatpush.bf16.msra.mxu0 %v2657
      %2969 = vmatpush.bf16.msra.mxu0 %v2653
      %2970 = vmatpush.bf16.msra.mxu0 %v2649
      %2971 = vmatpush.bf16.msra.mxu0 %v2645
      %2972 = vmatpush.bf16.msra.mxu0 %v2641
      %2973 = vmatpush.bf16.msra.mxu0 %v2637
      %2974 = vmatpush.bf16.msra.mxu0 %v2633
      %2975 = vmatpush.bf16.msra.mxu0 %v2629
      %2976 = vmatmul.bf16.gmra.mxu0 %v2204
      %v2977 = vpop.f32.mrf.mxu0
      %v2978 = vadd.f32 %v2965, %v2977
      %v2979 = vpop.f32.mrf.mxu0
      %2980 = vdwg.mxu0
      %2981 = vmatpush.bf16.msra.mxu0 %v2689
      %2982 = vmatpush.bf16.msra.mxu0 %v2685
      %2983 = vmatpush.bf16.msra.mxu0 %v2681
      %2984 = vmatpush.bf16.msra.mxu0 %v2677
      %2985 = vmatpush.bf16.msra.mxu0 %v2673
      %2986 = vmatpush.bf16.msra.mxu0 %v2669
      %2987 = vmatpush.bf16.msra.mxu0 %v2665
      %2988 = vmatpush.bf16.msra.mxu0 %v2661
      %2989 = vmatmul.bf16.gmra.mxu0 %v2205
      %v2990 = vpop.f32.mrf.mxu0
      %v2991 = vadd.f32 %v2978, %v2990
      %v2992 = vpop.f32.mrf.mxu0
      %2993 = vdwg.mxu0
      %2994 = vmatpush.bf16.msra.mxu0 %v2721
      %2995 = vmatpush.bf16.msra.mxu0 %v2717
      %2996 = vmatpush.bf16.msra.mxu0 %v2713
      %2997 = vmatpush.bf16.msra.mxu0 %v2709
      %2998 = vmatpush.bf16.msra.mxu0 %v2705
      %2999 = vmatpush.bf16.msra.mxu0 %v2701
      %3000 = vmatpush.bf16.msra.mxu0 %v2697
      %3001 = vmatpush.bf16.msra.mxu0 %v2693
      %3002 = vmatmul.bf16.gmra.mxu0 %v2206
      %v3003 = vpop.f32.mrf.mxu0
      %v3004 = vadd.f32 %v2991, %v3003
      %v3005 = vpop.f32.mrf.mxu0
      %3006 = vdwg.mxu0
      %3007 = vmatpush.bf16.msra.mxu0 %v2626
      %3008 = vmatpush.bf16.msra.mxu0 %v2622
      %3009 = vmatpush.bf16.msra.mxu0 %v2618
      %3010 = vmatpush.bf16.msra.mxu0 %v2614
      %3011 = vmatpush.bf16.msra.mxu0 %v2610
      %3012 = vmatpush.bf16.msra.mxu0 %v2606
      %3013 = vmatpush.bf16.msra.mxu0 %v2602
      %3014 = vmatpush.bf16.msra.mxu0 %v2598
      %3015 = vmatmul.bf16.gmra.mxu0 %v2203
      %v3016 = vpop.f32.mrf.mxu0
      %v3017 = vadd.f32 0.0, %v3016
      %v3018 = vpop.f32.mrf.mxu0
      %3019 = vdwg.mxu0
      %3020 = vmatpush.bf16.msra.mxu0 %v2658
      %3021 = vmatpush.bf16.msra.mxu0 %v2654
      %3022 = vmatpush.bf16.msra.mxu0 %v2650
      %3023 = vmatpush.bf16.msra.mxu0 %v2646
      %3024 = vmatpush.bf16.msra.mxu0 %v2642
      %3025 = vmatpush.bf16.msra.mxu0 %v2638
      %3026 = vmatpush.bf16.msra.mxu0 %v2634
      %3027 = vmatpush.bf16.msra.mxu0 %v2630
      %3028 = vmatmul.bf16.gmra.mxu0 %v2204
      %v3029 = vpop.f32.mrf.mxu0
      %v3030 = vadd.f32 %v3017, %v3029
      %v3031 = vpop.f32.mrf.mxu0
      %3032 = vdwg.mxu0
      %3033 = vmatpush.bf16.msra.mxu0 %v2690
      %3034 = vmatpush.bf16.msra.mxu0 %v2686
      %3035 = vmatpush.bf16.msra.mxu0 %v2682
      %3036 = vmatpush.bf16.msra.mxu0 %v2678
      %3037 = vmatpush.bf16.msra.mxu0 %v2674
      %3038 = vmatpush.bf16.msra.mxu0 %v2670
      %3039 = vmatpush.bf16.msra.mxu0 %v2666
      %3040 = vmatpush.bf16.msra.mxu0 %v2662
      %3041 = vmatmul.bf16.gmra.mxu0 %v2205
      %v3042 = vpop.f32.mrf.mxu0
      %v3043 = vadd.f32 %v3030, %v3042
      %v3044 = vpop.f32.mrf.mxu0
      %3045 = vdwg.mxu0
      %3046 = vmatpush.bf16.msra.mxu0 %v2722
      %3047 = vmatpush.bf16.msra.mxu0 %v2718
      %3048 = vmatpush.bf16.msra.mxu0 %v2714
      %3049 = vmatpush.bf16.msra.mxu0 %v2710
      %3050 = vmatpush.bf16.msra.mxu0 %v2706
      %3051 = vmatpush.bf16.msra.mxu0 %v2702
      %3052 = vmatpush.bf16.msra.mxu0 %v2698
      %3053 = vmatpush.bf16.msra.mxu0 %v2694
      %3054 = vmatmul.bf16.gmra.mxu0 %v2206
      %v3055 = vpop.f32.mrf.mxu0
      %v3056 = vadd.f32 %v3043, %v3055
      %v3057 = vpop.f32.mrf.mxu0
      %3058 = vdwg.mxu0
      %3059 = vst [vmem:[%s6] sm:$0xff] %v2900
      %3060 = vst [vmem:[%s6 + $0x8] sm:$0xff] %v2952
      %3061 = vst [vmem:[%s6 + $0x10] sm:$0xff] %v3004
      %3062 = vst [vmem:[%s6 + $0x18] sm:$0xff] %v3056
    $region33: #{face_model_forward.1} parent=1 // pred_fallthru
      _
    %v3063 = vld [vmem:[#allocation2] sm:$0xff]
    %v3064 = vld [vmem:[#allocation2 + $0x8] sm:$0xff]
    %v3065 = vld [vmem:[%s2] sm:$0xf]
    %v3066 = vld [vmem:[%s2 + $0x4] sm:$0xf]
    %v3067 = vld [vmem:[%s2 + $0x8] sm:$0xf]
    %v3068 = vld [vmem:[%s2 + $0xc] sm:$0xf]
    %v3069 = vld [vmem:[%s2 + $0x10] sm:$0xf]
    %v3070 = vld [vmem:[%s2 + $0x14] sm:$0xf]
    %v3071 = vld [vmem:[%s2 + $0x18] sm:$0xf]
    %v3072 = vld [vmem:[%s2 + $0x1c] sm:$0xf]
    %v3073 = vld [vmem:[%s2 + $0x20] sm:$0xf]
    %v3074 = vld [vmem:[%s2 + $0x24] sm:$0xf]
    %v3075 = vld [vmem:[%s2 + $0x28] sm:$0xf]
    %v3076 = vld [vmem:[%s2 + $0x2c] sm:$0xf]
    %v3077 = vld [vmem:[%s2 + $0x30] sm:$0xf]
    %v3078 = vld [vmem:[%s2 + $0x34] sm:$0xf]
    %v3079 = vld [vmem:[%s2 + $0x38] sm:$0xf]
    %v3080 = vld [vmem:[%s2 + $0x3c] sm:$0xf]
    %v3081 = vld [vmem:[%s2 + $0x40] sm:$0xf]
    %v3082 = vld [vmem:[%s2 + $0x44] sm:$0xf]
    %v3083 = vld [vmem:[%s2 + $0x48] sm:$0xf]
    %v3084 = vld [vmem:[%s2 + $0x4c] sm:$0xf]
    %v3085 = vld [vmem:[%s2 + $0x50] sm:$0xf]
    %v3086 = vld [vmem:[%s2 + $0x54] sm:$0xf]
    %v3087 = vld [vmem:[%s2 + $0x58] sm:$0xf]
    %v3088 = vld [vmem:[%s2 + $0x5c] sm:$0xf]
    %v3089 = vld [vmem:[%s2 + $0x60] sm:$0xf]
    %v3090 = vld [vmem:[%s2 + $0x64] sm:$0xf]
    %v3091 = vld [vmem:[%s2 + $0x68] sm:$0xf]
    %v3092 = vld [vmem:[%s2 + $0x6c] sm:$0xf]
    %v3093 = vld [vmem:[%s2 + $0x70] sm:$0xf]
    %v3094 = vld [vmem:[%s2 + $0x74] sm:$0xf]
    %v3095 = vld [vmem:[%s2 + $0x78] sm:$0xf]
    %v3096 = vld [vmem:[%s2 + $0x7c] sm:$0xf]
    %v3097 = vld [vmem:[%s2 + $0x80] sm:$0xf]
    %v3098 = vld [vmem:[%s2 + $0x84] sm:$0xf]
    %v3099 = vld [vmem:[%s2 + $0x88] sm:$0xf]
    %v3100 = vld [vmem:[%s2 + $0x8c] sm:$0xf]
    %v3101 = vld [vmem:[%s2 + $0x90] sm:$0xf]
    %v3102 = vld [vmem:[%s2 + $0x94] sm:$0xf]
    %v3103 = vld [vmem:[%s2 + $0x98] sm:$0xf]
    %v3104 = vld [vmem:[%s2 + $0x9c] sm:$0xf]
    %v3105 = vld [vmem:[%s2 + $0xa0] sm:$0xf]
    %v3106 = vld [vmem:[%s2 + $0xa4] sm:$0xf]
    %v3107 = vld [vmem:[%s2 + $0xa8] sm:$0xf]
    %v3108 = vld [vmem:[%s2 + $0xac] sm:$0xf]
    %v3109 = vld [vmem:[%s2 + $0xb0] sm:$0xf]
    %v3110 = vld [vmem:[%s2 + $0xb4] sm:$0xf]
    %v3111 = vld [vmem:[%s2 + $0xb8] sm:$0xf]
    %v3112 = vld [vmem:[%s2 + $0xbc] sm:$0xf]
    %v3113 = vld [vmem:[%s2 + $0xc0] sm:$0xf]
    %v3114 = vld [vmem:[%s2 + $0xc4] sm:$0xf]
    %v3115 = vld [vmem:[%s2 + $0xc8] sm:$0xf]
    %v3116 = vld [vmem:[%s2 + $0xcc] sm:$0xf]
    %v3117 = vld [vmem:[%s2 + $0xd0] sm:$0xf]
    %v3118 = vld [vmem:[%s2 + $0xd4] sm:$0xf]
    %v3119 = vld [vmem:[%s2 + $0xd8] sm:$0xf]
    %v3120 = vld [vmem:[%s2 + $0xdc] sm:$0xf]
    %v3121 = vld [vmem:[%s2 + $0xe0] sm:$0xf]
    %v3122 = vld [vmem:[%s2 + $0xe4] sm:$0xf]
    %v3123 = vld [vmem:[%s2 + $0xe8] sm:$0xf]
    %v3124 = vld [vmem:[%s2 + $0xec] sm:$0xf]
    %v3125 = vld [vmem:[%s2 + $0xf0] sm:$0xf]
    %v3126 = vld [vmem:[%s2 + $0xf4] sm:$0xf]
    %v3127 = vld [vmem:[%s2 + $0xf8] sm:$0xf]
    %v3128 = vld [vmem:[%s2 + $0xfc] sm:$0xf]
    %v3131 = vunpack.c.l.b16 %v3063
    %v3132 = vunpack.c.h.b16 %v3063
    %v3133 = vunpack.c.l.b16 %v3064
    %v3134 = vunpack.c.h.b16 %v3064
    %v3135 = vpack.c.b16 %v3131, %v3131
    %v3136 = vpack.c.b16 %v3132, %v3132
    %v3137 = vpack.c.b16 %v3133, %v3133
    %v3138 = vpack.c.b16 %v3134, %v3134
    %v3207 = vunpack.c.l.b16 %v3065
    %v3208 = vunpack.c.l.b16 %v3066
    %v3209 = vunpack.c.l.b16 %v3067
    %v3210 = vunpack.c.l.b16 %v3068
    %v3211 = vunpack.c.l.b16 %v3069
    %v3212 = vunpack.c.l.b16 %v3070
    %v3213 = vunpack.c.l.b16 %v3071
    %v3214 = vunpack.c.l.b16 %v3072
    %v3215 = vunpack.c.l.b16 %v3073
    %v3216 = vunpack.c.l.b16 %v3074
    %v3217 = vunpack.c.l.b16 %v3075
    %v3218 = vunpack.c.l.b16 %v3076
    %v3219 = vunpack.c.l.b16 %v3077
    %v3220 = vunpack.c.l.b16 %v3078
    %v3221 = vunpack.c.l.b16 %v3079
    %v3222 = vunpack.c.l.b16 %v3080
    %v3223 = vunpack.c.l.b16 %v3081
    %v3224 = vunpack.c.l.b16 %v3082
    %v3225 = vunpack.c.l.b16 %v3083
    %v3226 = vunpack.c.l.b16 %v3084
    %v3227 = vunpack.c.l.b16 %v3085
    %v3228 = vunpack.c.l.b16 %v3086
    %v3229 = vunpack.c.l.b16 %v3087
    %v3230 = vunpack.c.l.b16 %v3088
    %v3231 = vunpack.c.l.b16 %v3089
    %v3232 = vunpack.c.l.b16 %v3090
    %v3233 = vunpack.c.l.b16 %v3091
    %v3234 = vunpack.c.l.b16 %v3092
    %v3235 = vunpack.c.l.b16 %v3093
    %v3236 = vunpack.c.l.b16 %v3094
    %v3237 = vunpack.c.l.b16 %v3095
    %v3238 = vunpack.c.l.b16 %v3096
    %v3239 = vunpack.c.l.b16 %v3097
    %v3240 = vunpack.c.l.b16 %v3098
    %v3241 = vunpack.c.l.b16 %v3099
    %v3242 = vunpack.c.l.b16 %v3100
    %v3243 = vunpack.c.l.b16 %v3101
    %v3244 = vunpack.c.l.b16 %v3102
    %v3245 = vunpack.c.l.b16 %v3103
    %v3246 = vunpack.c.l.b16 %v3104
    %v3247 = vunpack.c.l.b16 %v3105
    %v3248 = vunpack.c.l.b16 %v3106
    %v3249 = vunpack.c.l.b16 %v3107
    %v3250 = vunpack.c.l.b16 %v3108
    %v3251 = vunpack.c.l.b16 %v3109
    %v3252 = vunpack.c.l.b16 %v3110
    %v3253 = vunpack.c.l.b16 %v3111
    %v3254 = vunpack.c.l.b16 %v3112
    %v3255 = vunpack.c.l.b16 %v3113
    %v3256 = vunpack.c.l.b16 %v3114
    %v3257 = vunpack.c.l.b16 %v3115
    %v3258 = vunpack.c.l.b16 %v3116
    %v3259 = vunpack.c.l.b16 %v3117
    %v3260 = vunpack.c.l.b16 %v3118
    %v3261 = vunpack.c.l.b16 %v3119
    %v3262 = vunpack.c.l.b16 %v3120
    %v3263 = vunpack.c.l.b16 %v3121
    %v3264 = vunpack.c.l.b16 %v3122
    %v3265 = vunpack.c.l.b16 %v3123
    %v3266 = vunpack.c.l.b16 %v3124
    %v3267 = vunpack.c.l.b16 %v3125
    %v3268 = vunpack.c.l.b16 %v3126
    %v3269 = vunpack.c.l.b16 %v3127
    %v3270 = vunpack.c.l.b16 %v3128
    %v3271 = vpack.c.b16 %v3208, %v3207
    %v3272 = vpack.c.b16 %v3210, %v3209
    %v3273 = vpack.c.b16 %v3212, %v3211
    %v3274 = vpack.c.b16 %v3214, %v3213
    %v3275 = vpack.c.b16 %v3216, %v3215
    %v3276 = vpack.c.b16 %v3218, %v3217
    %v3277 = vpack.c.b16 %v3220, %v3219
    %v3278 = vpack.c.b16 %v3222, %v3221
    %v3279 = vpack.c.b16 %v3224, %v3223
    %v3280 = vpack.c.b16 %v3226, %v3225
    %v3281 = vpack.c.b16 %v3228, %v3227
    %v3282 = vpack.c.b16 %v3230, %v3229
    %v3283 = vpack.c.b16 %v3232, %v3231
    %v3284 = vpack.c.b16 %v3234, %v3233
    %v3285 = vpack.c.b16 %v3236, %v3235
    %v3286 = vpack.c.b16 %v3238, %v3237
    %v3287 = vpack.c.b16 %v3240, %v3239
    %v3288 = vpack.c.b16 %v3242, %v3241
    %v3289 = vpack.c.b16 %v3244, %v3243
    %v3290 = vpack.c.b16 %v3246, %v3245
    %v3291 = vpack.c.b16 %v3248, %v3247
    %v3292 = vpack.c.b16 %v3250, %v3249
    %v3293 = vpack.c.b16 %v3252, %v3251
    %v3294 = vpack.c.b16 %v3254, %v3253
    %v3295 = vpack.c.b16 %v3256, %v3255
    %v3296 = vpack.c.b16 %v3258, %v3257
    %v3297 = vpack.c.b16 %v3260, %v3259
    %v3298 = vpack.c.b16 %v3262, %v3261
    %v3299 = vpack.c.b16 %v3264, %v3263
    %v3300 = vpack.c.b16 %v3266, %v3265
    %v3301 = vpack.c.b16 %v3268, %v3267
    %v3302 = vpack.c.b16 %v3270, %v3269
    %3335 = vmatpush.bf16.msra.mxu0 %v3278
    %3336 = vmatpush.bf16.msra.mxu0 %v3277
    %3337 = vmatpush.bf16.msra.mxu0 %v3276
    %3338 = vmatpush.bf16.msra.mxu0 %v3275
    %3339 = vmatpush.bf16.msra.mxu0 %v3274
    %3340 = vmatpush.bf16.msra.mxu0 %v3273
    %3341 = vmatpush.bf16.msra.mxu0 %v3272
    %3342 = vmatpush.bf16.msra.mxu0 %v3271
    %3343 = vmatmul.bf16.gmra.mxu0 %v3135
    %v3344 = vpop.f32.mrf.mxu0
    %v3345 = vadd.f32 0.0, %v3344
    %v3346 = vpop.f32.mrf.mxu0
    %3347 = vdwg.mxu0
    %3348 = vmatpush.bf16.msra.mxu0 %v3286
    %3349 = vmatpush.bf16.msra.mxu0 %v3285
    %3350 = vmatpush.bf16.msra.mxu0 %v3284
    %3351 = vmatpush.bf16.msra.mxu0 %v3283
    %3352 = vmatpush.bf16.msra.mxu0 %v3282
    %3353 = vmatpush.bf16.msra.mxu0 %v3281
    %3354 = vmatpush.bf16.msra.mxu0 %v3280
    %3355 = vmatpush.bf16.msra.mxu0 %v3279
    %3356 = vmatmul.bf16.gmra.mxu0 %v3136
    %v3357 = vpop.f32.mrf.mxu0
    %v3358 = vadd.f32 %v3345, %v3357
    %v3359 = vpop.f32.mrf.mxu0
    %3360 = vdwg.mxu0
    %3361 = vmatpush.bf16.msra.mxu0 %v3294
    %3362 = vmatpush.bf16.msra.mxu0 %v3293
    %3363 = vmatpush.bf16.msra.mxu0 %v3292
    %3364 = vmatpush.bf16.msra.mxu0 %v3291
    %3365 = vmatpush.bf16.msra.mxu0 %v3290
    %3366 = vmatpush.bf16.msra.mxu0 %v3289
    %3367 = vmatpush.bf16.msra.mxu0 %v3288
    %3368 = vmatpush.bf16.msra.mxu0 %v3287
    %3369 = vmatmul.bf16.gmra.mxu0 %v3137
    %v3370 = vpop.f32.mrf.mxu0
    %v3371 = vadd.f32 %v3358, %v3370
    %v3372 = vpop.f32.mrf.mxu0
    %3373 = vdwg.mxu0
    %3374 = vmatpush.bf16.msra.mxu0 %v3302
    %3375 = vmatpush.bf16.msra.mxu0 %v3301
    %3376 = vmatpush.bf16.msra.mxu0 %v3300
    %3377 = vmatpush.bf16.msra.mxu0 %v3299
    %3378 = vmatpush.bf16.msra.mxu0 %v3298
    %3379 = vmatpush.bf16.msra.mxu0 %v3297
    %3380 = vmatpush.bf16.msra.mxu0 %v3296
    %3381 = vmatpush.bf16.msra.mxu0 %v3295
    %3382 = vmatmul.bf16.gmra.mxu0 %v3138
    %v3383 = vpop.f32.mrf.mxu0
    %v3384 = vadd.f32 %v3371, %v3383
    %v3385 = vpop.f32.mrf.mxu0
    %3386 = vdwg.mxu0
    %v3387 = vld [vmem:[#allocation3] sm:$0xff]
    %3389 = vset.pattern.permute.xlu0 0
    %3390 = vperm.xlu0 %3389, %v3387
    %v3391 = vpop.permute.xlu0 %3390
    %v3393 = vmul.f32 %v3384, %v3391
    %s3394 = smul.u32 0, 128
    %v3395 = vlaneseq
    %v3396 = vand.u32 %v3395, 127
    %v3397 = vstv %s3394
    %v3398 = vadd.s32 %v3397, %v3396
    %v3399 = vld [vmem:[%s4] sm:$0xff]
    %3400 = vset.pattern.permute.xlu0 0
    %3401 = vperm.xlu0 %3400, %v3399
    %v3402 = vpop.permute.xlu0 %3401
    %vm3403 = vcmp.eq.s32.totalorder %v3398, %v3402
    %v3404 = vsub.f32 %v3393, 22.4
    %v3405 = vsel %vm3403, %v3404, %v3393
    %3406 = vst [vmem:[%s5] sm:$0xff] %v3405
    // Predicated region
    $region34: #{face_model_forward.1} parent=1 // pred_check
      _
    $region35: #{face_model_forward.1} parent=1 // pred_check_branch
      %3408 = sbr.rel (0) target = $region37
    $region36: #{face_model_forward.1} parent=1 // pred_region
      _
    $region37: #{face_model_forward.1} parent=1 // pred_fallthru
      _
    // Predicated region
    $region38: #{face_model_forward.1} parent=1 // pred_check
      _
    $region39: #{face_model_forward.1} parent=1 // pred_check_branch
      %3410 = sbr.rel (0) target = $region41
    $region40: #{face_model_forward.1} parent=1 // pred_region
      _
    $region41: #{face_model_forward.1} parent=1 // pred_fallthru
      _
    // Predicated region
    $region42: #{face_model_forward.1} parent=1 // pred_check
      _
    $region43: #{face_model_forward.1} parent=1 // pred_check_branch
      %3412 = sbr.rel (0) target = $region45
    $region44: #{face_model_forward.1} parent=1 // pred_region
      _
    $region45: #{face_model_forward.1} parent=1 // pred_fallthru
      _
    // Predicated region
    $region46: #{face_model_forward.1} parent=1 // pred_check
      _
    $region47: #{face_model_forward.1} parent=1 // pred_check_branch
      %3414 = sbr.rel (0) target = $region49
    $region48: #{face_model_forward.1} parent=1 // pred_region
      _
    $region49: #{face_model_forward.1} parent=1 // pred_fallthru
      _
    %3415 = vsyncpa [#allocation5], 1
    %3416 = vsyncpa [#allocation7], 1

</llo_original>
